<compile_context>
chip_gen: v5e
topology: v5e:2x2
jax: 0.10.0
libtpu: 0.0.40
codegen_flags: <defaults>
</compile_context>

<pallas_src>
import jax
import jax.numpy as jnp
import numpy as np
from jax.experimental import pallas as pl
from jax.experimental.pallas import tpu as pltpu

HID_DIM = 128
N_HEADS = 8
HEAD_DIM = HID_DIM // N_HEADS          # 16
SCALE = float(np.sqrt(HEAD_DIM))       # torch.sqrt(FloatTensor([hid_dim // n_heads]))


def _self_attention_kernel(q_ref, k_ref, v_ref,
                           wq_ref, bq_ref, wk_ref, bk_ref,
                           wv_ref, bv_ref, wf_ref, bf_ref,
                           o_ref):
    """One block of Bt batch elements per grid step.

    q_ref/k_ref/v_ref : (Bt, S, D)  bf16 activations (VMEM)
    w*_ref            : (D, D)      bf16 pre-transposed weights (VMEM)
    b*_ref            : (1, D)      f32 biases (VMEM)
    o_ref             : (Bt, S, D)  f32 output
    """
    Bt, S, D = q_ref.shape

    # ---- Projections: one big lane-dense MXU matmul each (bf16 in, f32 acc).
    xq = q_ref[...].reshape(Bt * S, D)
    xk = k_ref[...].reshape(Bt * S, D)
    xv = v_ref[...].reshape(Bt * S, D)

    # 1/sqrt(head_dim) is already folded into wq/bq by the wrapper.
    Q = jnp.dot(xq, wq_ref[...], preferred_element_type=jnp.float32) + bq_ref[...]
    K = jnp.dot(xk, wk_ref[...], preferred_element_type=jnp.float32) + bk_ref[...]
    V = jnp.dot(xv, wv_ref[...], preferred_element_type=jnp.float32) + bv_ref[...]

    Qb = Q.reshape(Bt, S, D).astype(jnp.bfloat16)
    Kb = K.reshape(Bt, S, D).astype(jnp.bfloat16)
    Vb = V.reshape(Bt, S, D).astype(jnp.bfloat16)

    # ---- Multi-head attention.  Head h = lanes [h*16, (h+1)*16).
    # Static python loop -> fully unrolled.  Batched 3-D einsums keep the
    # batch dim together and avoid any explicit K transpose.
    head_ctx = []
    for h in range(N_HEADS):
        sl = slice(h * HEAD_DIM, (h + 1) * HEAD_DIM)
        qh = Qb[:, :, sl]                           # (Bt, S, d) bf16
        kh = Kb[:, :, sl]
        vh = Vb[:, :, sl]

        # (Bt, S, S) f32 scores; contraction over last axis (no kh.T).
        energy = jnp.einsum('bqd,bkd->bqk', qh, kh,
                            preferred_element_type=jnp.float32)

        # Numerically-stable softmax, f32 statistics.
        m = jnp.max(energy, axis=-1, keepdims=True)
        e = jnp.exp(energy - m)
        attn = e * pl.reciprocal(jnp.sum(e, axis=-1, keepdims=True), approx=True)

        # TODO(synk): dropout on `attn` is identity here (inference / eval mode).
        ctx = jnp.einsum('bqk,bkd->bqd', attn.astype(jnp.bfloat16), vh,
                         preferred_element_type=jnp.float32)      # (Bt, S, d)
        head_ctx.append(ctx)

    # Regroup heads onto the lane axis once -> lane-dense (Bt*S, 128) operand
    # for the output projection (single cast to bf16 afterwards).
    x = jnp.concatenate(head_ctx, axis=-1).reshape(Bt * S, D).astype(jnp.bfloat16)

    out = jnp.dot(x, wf_ref[...], preferred_element_type=jnp.float32) + bf_ref[...]
    o_ref[...] = out.reshape(Bt, S, D).astype(o_ref.dtype)


def self_attention_pallas(query, key, value, params, *, batch_block=8):
    """query/key/value: (B, S, D) float32.  params: dict of torch-layout weights."""
    B, S, D = query.shape
    assert D == HID_DIM

    # Block several batch elements per grid step; pad B if needed.
    Bt = min(batch_block, B)
    Bpad = pl.cdiv(B, Bt) * Bt
    if Bpad != B:
        pad = ((0, Bpad - B), (0, 0), (0, 0))
        query = jnp.pad(query, pad)
        key = jnp.pad(key, pad)
        value = jnp.pad(value, pad)

    # bf16 MXU feeds (halves HBM->VMEM traffic); f32 accumulation in-kernel.
    q = query.astype(jnp.bfloat16)
    k = key.astype(jnp.bfloat16)
    v = value.astype(jnp.bfloat16)

    # Pre-transpose torch-layout (out, in) -> (in, out); fold 1/scale into w_q/b_q.
    wq = (params["wq"].T / SCALE).astype(jnp.bfloat16)
    wk = params["wk"].T.astype(jnp.bfloat16)
    wv = params["wv"].T.astype(jnp.bfloat16)
    wf = params["wf"].T.astype(jnp.bfloat16)
    bq = (params["bq"] / SCALE).reshape(1, D).astype(jnp.float32)
    bk = params["bk"].reshape(1, D).astype(jnp.float32)
    bv = params["bv"].reshape(1, D).astype(jnp.float32)
    bf = params["bf"].reshape(1, D).astype(jnp.float32)

    act_spec = pl.BlockSpec((Bt, S, D), lambda b: (b, 0, 0))
    w_spec = pl.BlockSpec((D, D), lambda b: (0, 0))
    b_spec = pl.BlockSpec((1, D), lambda b: (0, 0))

    out = pl.pallas_call(
        _self_attention_kernel,
        out_shape=jax.ShapeDtypeStruct((Bpad, S, D), jnp.float32),
        grid_spec=pltpu.PrefetchScalarGridSpec(
            num_scalar_prefetch=0,
            grid=(Bpad // Bt,),
            in_specs=[act_spec, act_spec, act_spec,
                      w_spec, b_spec, w_spec, b_spec,
                      w_spec, b_spec, w_spec, b_spec],
            out_specs=pl.BlockSpec((Bt, S, D), lambda b: (b, 0, 0)),
        ),
        compiler_params=pltpu.CompilerParams(
            dimension_semantics=("parallel",)),
    )(q, k, v, wq, bq, wk, bk, wv, bv, wf, bf)
    return out[:B]


def self_attention_ref(query, key, value, params):
    """Plain-JAX f32 reference mirroring the torch forward (mask=None, eval dropout)."""
    B, S, D = query.shape
    Q = query @ params["wq"].T + params["bq"]
    K = key   @ params["wk"].T + params["bk"]
    V = value @ params["wv"].T + params["bv"]

    def split_heads(x):
        return x.reshape(B, S, N_HEADS, HEAD_DIM).transpose(0, 2, 1, 3)

    Qh, Kh, Vh = split_heads(Q), split_heads(K), split_heads(V)
    energy = jnp.einsum("bhqd,bhkd->bhqk", Qh, Kh) / SCALE
    attn = jax.nn.softmax(energy, axis=-1)
    ctx = jnp.einsum("bhqk,bhkd->bhqd", attn, Vh)
    x = ctx.transpose(0, 2, 1, 3).reshape(B, S, D)
    return x @ params["wf"].T + params["bf"]


def init_params(key):
    """Deterministic params with torch nn.Linear layout: W (out, in), b (out,)."""
    bound = 1.0 / np.sqrt(HID_DIM)
    keys = jax.random.split(key, 8)
    u = lambda k, shape: jax.random.uniform(k, shape, jnp.float32, -bound, bound)
    return {
        "wq": u(keys[0], (HID_DIM, HID_DIM)), "bq": u(keys[1], (HID_DIM,)),
        "wk": u(keys[2], (HID_DIM, HID_DIM)), "bk": u(keys[3], (HID_DIM,)),
        "wv": u(keys[4], (HID_DIM, HID_DIM)), "bv": u(keys[5], (HID_DIM,)),
        "wf": u(keys[6], (HID_DIM, HID_DIM)), "bf": u(keys[7], (HID_DIM,)),
    }


if __name__ == "__main__":
    B, S = 2, 8
    root = jax.random.PRNGKey(0)
    k_param, k_q, k_k, k_v = jax.random.split(root, 4)

    params = init_params(k_param)
    query = jax.random.normal(k_q, (B, S, HID_DIM), jnp.float32)
    key_in = jax.random.normal(k_k, (B, S, HID_DIM), jnp.float32)
    value = jax.random.normal(k_v, (B, S, HID_DIM), jnp.float32)

    out = self_attention_pallas(query, key_in, value, params)
    out = jax.block_until_ready(out)

    ref = self_attention_ref(query, key_in, value, params)
    assert out.shape == (B, S, HID_DIM)
    # bf16 MXU inputs with f32 accumulation -> slightly looser tolerance than pure f32.
    assert bool(jnp.allclose(out, ref, rtol=5e-2, atol=5e-2)), "mismatch vs reference"

    print("KERNEL_OK")
</pallas_src>

<mosaic_0001>
module attributes {stable_mosaic.version = 11 : i64} {
  func.func @_self_attention_kernel(%arg0: i32, %arg1: memref<2x8x128xbf16, #tpu.memory_space<vmem>>, %arg2: memref<2x8x128xbf16, #tpu.memory_space<vmem>>, %arg3: memref<2x8x128xbf16, #tpu.memory_space<vmem>>, %arg4: memref<128x128xbf16, #tpu.memory_space<vmem>>, %arg5: memref<1x128xf32, #tpu.memory_space<vmem>>, %arg6: memref<128x128xbf16, #tpu.memory_space<vmem>>, %arg7: memref<1x128xf32, #tpu.memory_space<vmem>>, %arg8: memref<128x128xbf16, #tpu.memory_space<vmem>>, %arg9: memref<1x128xf32, #tpu.memory_space<vmem>>, %arg10: memref<128x128xbf16, #tpu.memory_space<vmem>>, %arg11: memref<1x128xf32, #tpu.memory_space<vmem>>, %arg12: memref<2x8x128xf32, #tpu.memory_space<vmem>>) attributes {dimension_semantics = [#tpu.dimension_semantics<parallel>], iteration_bounds = array<i64: 1>, scalar_prefetch = 0 : i64, scratch_operands = 0 : i64, tpu.core_type = #tpu.core_type<tc>, window_params = [{transform_indices = @transform_0, window_bounds = array<i64: 2, 8, 128>}, {transform_indices = @transform_1, window_bounds = array<i64: 2, 8, 128>}, {transform_indices = @transform_2, window_bounds = array<i64: 2, 8, 128>}, {pipeline_mode = #tpu.pipeline_mode<synchronous>, transform_indices = @transform_3, window_bounds = array<i64: 128, 128>}, {pipeline_mode = #tpu.pipeline_mode<synchronous>, transform_indices = @transform_4, window_bounds = array<i64: 1, 128>}, {pipeline_mode = #tpu.pipeline_mode<synchronous>, transform_indices = @transform_5, window_bounds = array<i64: 128, 128>}, {pipeline_mode = #tpu.pipeline_mode<synchronous>, transform_indices = @transform_6, window_bounds = array<i64: 1, 128>}, {pipeline_mode = #tpu.pipeline_mode<synchronous>, transform_indices = @transform_7, window_bounds = array<i64: 128, 128>}, {pipeline_mode = #tpu.pipeline_mode<synchronous>, transform_indices = @transform_8, window_bounds = array<i64: 1, 128>}, {pipeline_mode = #tpu.pipeline_mode<synchronous>, transform_indices = @transform_9, window_bounds = array<i64: 128, 128>}, {pipeline_mode = #tpu.pipeline_mode<synchronous>, transform_indices = @transform_10, window_bounds = array<i64: 1, 128>}, {transform_indices = @transform_11, window_bounds = array<i64: 2, 8, 128>}]} {
    %c0 = arith.constant 0 : index
    %c0_0 = arith.constant 0 : index
    %c0_1 = arith.constant 0 : index
    %0 = vector.load %arg1[%c0, %c0_0, %c0_1] : memref<2x8x128xbf16, #tpu.memory_space<vmem>>, vector<2x8x128xbf16>
    %1 = vector.shape_cast %0 : vector<2x8x128xbf16> to vector<16x128xbf16>
    %c0_2 = arith.constant 0 : index
    %c0_3 = arith.constant 0 : index
    %c0_4 = arith.constant 0 : index
    %2 = vector.load %arg2[%c0_2, %c0_3, %c0_4] : memref<2x8x128xbf16, #tpu.memory_space<vmem>>, vector<2x8x128xbf16>
    %3 = vector.shape_cast %2 : vector<2x8x128xbf16> to vector<16x128xbf16>
    %c0_5 = arith.constant 0 : index
    %c0_6 = arith.constant 0 : index
    %c0_7 = arith.constant 0 : index
    %4 = vector.load %arg3[%c0_5, %c0_6, %c0_7] : memref<2x8x128xbf16, #tpu.memory_space<vmem>>, vector<2x8x128xbf16>
    %5 = vector.shape_cast %4 : vector<2x8x128xbf16> to vector<16x128xbf16>
    %c0_8 = arith.constant 0 : index
    %c0_9 = arith.constant 0 : index
    %6 = vector.load %arg4[%c0_8, %c0_9] : memref<128x128xbf16, #tpu.memory_space<vmem>>, vector<128x128xbf16>
    %cst = arith.constant dense<0.000000e+00> : vector<16x128xf32>
    %7 = tpu.matmul %1, %6, %cst {dimension_numbers = #tpu.dot_dimension_numbers<[1], [0], [0], [1], [0, 0, 1, 1], [], []>} : vector<16x128xbf16>, vector<128x128xbf16>, vector<16x128xf32> -> vector<16x128xf32>
    %c0_10 = arith.constant 0 : index
    %c0_11 = arith.constant 0 : index
    %8 = vector.load %arg5[%c0_10, %c0_11] : memref<1x128xf32, #tpu.memory_space<vmem>>, vector<1x128xf32>
    %9 = vector.broadcast %8 : vector<1x128xf32> to vector<16x128xf32>
    %10 = arith.addf %7, %9 : vector<16x128xf32>
    %c0_12 = arith.constant 0 : index
    %c0_13 = arith.constant 0 : index
    %11 = vector.load %arg6[%c0_12, %c0_13] : memref<128x128xbf16, #tpu.memory_space<vmem>>, vector<128x128xbf16>
    %cst_14 = arith.constant dense<0.000000e+00> : vector<16x128xf32>
    %12 = tpu.matmul %3, %11, %cst_14 {dimension_numbers = #tpu.dot_dimension_numbers<[1], [0], [0], [1], [0, 0, 1, 1], [], []>} : vector<16x128xbf16>, vector<128x128xbf16>, vector<16x128xf32> -> vector<16x128xf32>
    %c0_15 = arith.constant 0 : index
    %c0_16 = arith.constant 0 : index
    %13 = vector.load %arg7[%c0_15, %c0_16] : memref<1x128xf32, #tpu.memory_space<vmem>>, vector<1x128xf32>
    %14 = vector.broadcast %13 : vector<1x128xf32> to vector<16x128xf32>
    %15 = arith.addf %12, %14 : vector<16x128xf32>
    %c0_17 = arith.constant 0 : index
    %c0_18 = arith.constant 0 : index
    %16 = vector.load %arg8[%c0_17, %c0_18] : memref<128x128xbf16, #tpu.memory_space<vmem>>, vector<128x128xbf16>
    %cst_19 = arith.constant dense<0.000000e+00> : vector<16x128xf32>
    %17 = tpu.matmul %5, %16, %cst_19 {dimension_numbers = #tpu.dot_dimension_numbers<[1], [0], [0], [1], [0, 0, 1, 1], [], []>} : vector<16x128xbf16>, vector<128x128xbf16>, vector<16x128xf32> -> vector<16x128xf32>
    %c0_20 = arith.constant 0 : index
    %c0_21 = arith.constant 0 : index
    %18 = vector.load %arg9[%c0_20, %c0_21] : memref<1x128xf32, #tpu.memory_space<vmem>>, vector<1x128xf32>
    %19 = vector.broadcast %18 : vector<1x128xf32> to vector<16x128xf32>
    %20 = arith.addf %17, %19 : vector<16x128xf32>
    %21 = vector.shape_cast %10 : vector<16x128xf32> to vector<2x8x128xf32>
    %22 = arith.truncf %21 : vector<2x8x128xf32> to vector<2x8x128xbf16>
    %23 = vector.shape_cast %15 : vector<16x128xf32> to vector<2x8x128xf32>
    %24 = arith.truncf %23 : vector<2x8x128xf32> to vector<2x8x128xbf16>
    %25 = vector.shape_cast %20 : vector<16x128xf32> to vector<2x8x128xf32>
    %26 = arith.truncf %25 : vector<2x8x128xf32> to vector<2x8x128xbf16>
    %27 = vector.extract_strided_slice %22 {offsets = [0, 0, 0], sizes = [2, 8, 16], strides = [1, 1, 1]} : vector<2x8x128xbf16> to vector<2x8x16xbf16>
    %28 = vector.extract_strided_slice %24 {offsets = [0, 0, 0], sizes = [2, 8, 16], strides = [1, 1, 1]} : vector<2x8x128xbf16> to vector<2x8x16xbf16>
    %29 = vector.extract_strided_slice %26 {offsets = [0, 0, 0], sizes = [2, 8, 16], strides = [1, 1, 1]} : vector<2x8x128xbf16> to vector<2x8x16xbf16>
    "tpu.trace_start"() <{level = 10 : i32, message = "bqd,bkd->bqk"}> : () -> ()
    %cst_22 = arith.constant dense<0.000000e+00> : vector<2x8x8xf32>
    %30 = tpu.matmul %27, %28, %cst_22 {dimension_numbers = #tpu.dot_dimension_numbers<[2], [2], [1], [1], [0, 0, 0, 1, 1, 1], [0], [0]>} : vector<2x8x16xbf16>, vector<2x8x16xbf16>, vector<2x8x8xf32> -> vector<2x8x8xf32>
    "tpu.trace_stop"() : () -> ()
    %cst_23 = arith.constant dense<0xFF800000> : vector<2x8xf32>
    %31 = vector.multi_reduction <maximumf>, %30, %cst_23 [2] : vector<2x8x8xf32> to vector<2x8xf32>
    %32 = vector.shape_cast %31 : vector<2x8xf32> to vector<2x8x1xf32>
    %33 = vector.broadcast %32 : vector<2x8x1xf32> to vector<2x8x8xf32>
    %34 = arith.subf %30, %33 : vector<2x8x8xf32>
    %35 = math.exp %34 : vector<2x8x8xf32>
    %cst_24 = arith.constant dense<0.000000e+00> : vector<2x8xf32>
    %36 = vector.multi_reduction <add>, %35, %cst_24 [2] : vector<2x8x8xf32> to vector<2x8xf32>
    %37 = vector.shape_cast %36 : vector<2x8xf32> to vector<2x8x1xf32>
    %38 = tpu.reciprocal %37 {approx = true} : vector<2x8x1xf32> -> vector<2x8x1xf32>
    %39 = vector.broadcast %38 : vector<2x8x1xf32> to vector<2x8x8xf32>
    %40 = arith.mulf %35, %39 : vector<2x8x8xf32>
    %41 = arith.truncf %40 : vector<2x8x8xf32> to vector<2x8x8xbf16>
    "tpu.trace_start"() <{level = 10 : i32, message = "bqk,bkd->bqd"}> : () -> ()
    %cst_25 = arith.constant dense<0.000000e+00> : vector<2x8x16xf32>
    %42 = tpu.matmul %41, %29, %cst_25 {dimension_numbers = #tpu.dot_dimension_numbers<[2], [1], [1], [2], [0, 0, 0, 1, 1, 2], [0], [0]>} : vector<2x8x8xbf16>, vector<2x8x16xbf16>, vector<2x8x16xf32> -> vector<2x8x16xf32>
    "tpu.trace_stop"() : () -> ()
    %43 = vector.extract_strided_slice %22 {offsets = [0, 0, 16], sizes = [2, 8, 16], strides = [1, 1, 1]} : vector<2x8x128xbf16> to vector<2x8x16xbf16>
    %44 = vector.extract_strided_slice %24 {offsets = [0, 0, 16], sizes = [2, 8, 16], strides = [1, 1, 1]} : vector<2x8x128xbf16> to vector<2x8x16xbf16>
    %45 = vector.extract_strided_slice %26 {offsets = [0, 0, 16], sizes = [2, 8, 16], strides = [1, 1, 1]} : vector<2x8x128xbf16> to vector<2x8x16xbf16>
    "tpu.trace_start"() <{level = 10 : i32, message = "bqd,bkd->bqk"}> : () -> ()
    %cst_26 = arith.constant dense<0.000000e+00> : vector<2x8x8xf32>
    %46 = tpu.matmul %43, %44, %cst_26 {dimension_numbers = #tpu.dot_dimension_numbers<[2], [2], [1], [1], [0, 0, 0, 1, 1, 1], [0], [0]>} : vector<2x8x16xbf16>, vector<2x8x16xbf16>, vector<2x8x8xf32> -> vector<2x8x8xf32>
    "tpu.trace_stop"() : () -> ()
    %cst_27 = arith.constant dense<0xFF800000> : vector<2x8xf32>
    %47 = vector.multi_reduction <maximumf>, %46, %cst_27 [2] : vector<2x8x8xf32> to vector<2x8xf32>
    %48 = vector.shape_cast %47 : vector<2x8xf32> to vector<2x8x1xf32>
    %49 = vector.broadcast %48 : vector<2x8x1xf32> to vector<2x8x8xf32>
    %50 = arith.subf %46, %49 : vector<2x8x8xf32>
    %51 = math.exp %50 : vector<2x8x8xf32>
    %cst_28 = arith.constant dense<0.000000e+00> : vector<2x8xf32>
    %52 = vector.multi_reduction <add>, %51, %cst_28 [2] : vector<2x8x8xf32> to vector<2x8xf32>
    %53 = vector.shape_cast %52 : vector<2x8xf32> to vector<2x8x1xf32>
    %54 = tpu.reciprocal %53 {approx = true} : vector<2x8x1xf32> -> vector<2x8x1xf32>
    %55 = vector.broadcast %54 : vector<2x8x1xf32> to vector<2x8x8xf32>
    %56 = arith.mulf %51, %55 : vector<2x8x8xf32>
    %57 = arith.truncf %56 : vector<2x8x8xf32> to vector<2x8x8xbf16>
    "tpu.trace_start"() <{level = 10 : i32, message = "bqk,bkd->bqd"}> : () -> ()
    %cst_29 = arith.constant dense<0.000000e+00> : vector<2x8x16xf32>
    %58 = tpu.matmul %57, %45, %cst_29 {dimension_numbers = #tpu.dot_dimension_numbers<[2], [1], [1], [2], [0, 0, 0, 1, 1, 2], [0], [0]>} : vector<2x8x8xbf16>, vector<2x8x16xbf16>, vector<2x8x16xf32> -> vector<2x8x16xf32>
    "tpu.trace_stop"() : () -> ()
    %59 = vector.extract_strided_slice %22 {offsets = [0, 0, 32], sizes = [2, 8, 16], strides = [1, 1, 1]} : vector<2x8x128xbf16> to vector<2x8x16xbf16>
    %60 = vector.extract_strided_slice %24 {offsets = [0, 0, 32], sizes = [2, 8, 16], strides = [1, 1, 1]} : vector<2x8x128xbf16> to vector<2x8x16xbf16>
    %61 = vector.extract_strided_slice %26 {offsets = [0, 0, 32], sizes = [2, 8, 16], strides = [1, 1, 1]} : vector<2x8x128xbf16> to vector<2x8x16xbf16>
    "tpu.trace_start"() <{level = 10 : i32, message = "bqd,bkd->bqk"}> : () -> ()
    %cst_30 = arith.constant dense<0.000000e+00> : vector<2x8x8xf32>
    %62 = tpu.matmul %59, %60, %cst_30 {dimension_numbers = #tpu.dot_dimension_numbers<[2], [2], [1], [1], [0, 0, 0, 1, 1, 1], [0], [0]>} : vector<2x8x16xbf16>, vector<2x8x16xbf16>, vector<2x8x8xf32> -> vector<2x8x8xf32>
    "tpu.trace_stop"() : () -> ()
    %cst_31 = arith.constant dense<0xFF800000> : vector<2x8xf32>
    %63 = vector.multi_reduction <maximumf>, %62, %cst_31 [2] : vector<2x8x8xf32> to vector<2x8xf32>
    %64 = vector.shape_cast %63 : vector<2x8xf32> to vector<2x8x1xf32>
    %65 = vector.broadcast %64 : vector<2x8x1xf32> to vector<2x8x8xf32>
    %66 = arith.subf %62, %65 : vector<2x8x8xf32>
    %67 = math.exp %66 : vector<2x8x8xf32>
    %cst_32 = arith.constant dense<0.000000e+00> : vector<2x8xf32>
    %68 = vector.multi_reduction <add>, %67, %cst_32 [2] : vector<2x8x8xf32> to vector<2x8xf32>
    %69 = vector.shape_cast %68 : vector<2x8xf32> to vector<2x8x1xf32>
    %70 = tpu.reciprocal %69 {approx = true} : vector<2x8x1xf32> -> vector<2x8x1xf32>
    %71 = vector.broadcast %70 : vector<2x8x1xf32> to vector<2x8x8xf32>
    %72 = arith.mulf %67, %71 : vector<2x8x8xf32>
    %73 = arith.truncf %72 : vector<2x8x8xf32> to vector<2x8x8xbf16>
    "tpu.trace_start"() <{level = 10 : i32, message = "bqk,bkd->bqd"}> : () -> ()
    %cst_33 = arith.constant dense<0.000000e+00> : vector<2x8x16xf32>
    %74 = tpu.matmul %73, %61, %cst_33 {dimension_numbers = #tpu.dot_dimension_numbers<[2], [1], [1], [2], [0, 0, 0, 1, 1, 2], [0], [0]>} : vector<2x8x8xbf16>, vector<2x8x16xbf16>, vector<2x8x16xf32> -> vector<2x8x16xf32>
    "tpu.trace_stop"() : () -> ()
    %75 = vector.extract_strided_slice %22 {offsets = [0, 0, 48], sizes = [2, 8, 16], strides = [1, 1, 1]} : vector<2x8x128xbf16> to vector<2x8x16xbf16>
    %76 = vector.extract_strided_slice %24 {offsets = [0, 0, 48], sizes = [2, 8, 16], strides = [1, 1, 1]} : vector<2x8x128xbf16> to vector<2x8x16xbf16>
    %77 = vector.extract_strided_slice %26 {offsets = [0, 0, 48], sizes = [2, 8, 16], strides = [1, 1, 1]} : vector<2x8x128xbf16> to vector<2x8x16xbf16>
    "tpu.trace_start"() <{level = 10 : i32, message = "bqd,bkd->bqk"}> : () -> ()
    %cst_34 = arith.constant dense<0.000000e+00> : vector<2x8x8xf32>
    %78 = tpu.matmul %75, %76, %cst_34 {dimension_numbers = #tpu.dot_dimension_numbers<[2], [2], [1], [1], [0, 0, 0, 1, 1, 1], [0], [0]>} : vector<2x8x16xbf16>, vector<2x8x16xbf16>, vector<2x8x8xf32> -> vector<2x8x8xf32>
    "tpu.trace_stop"() : () -> ()
    %cst_35 = arith.constant dense<0xFF800000> : vector<2x8xf32>
    %79 = vector.multi_reduction <maximumf>, %78, %cst_35 [2] : vector<2x8x8xf32> to vector<2x8xf32>
    %80 = vector.shape_cast %79 : vector<2x8xf32> to vector<2x8x1xf32>
    %81 = vector.broadcast %80 : vector<2x8x1xf32> to vector<2x8x8xf32>
    %82 = arith.subf %78, %81 : vector<2x8x8xf32>
    %83 = math.exp %82 : vector<2x8x8xf32>
    %cst_36 = arith.constant dense<0.000000e+00> : vector<2x8xf32>
    %84 = vector.multi_reduction <add>, %83, %cst_36 [2] : vector<2x8x8xf32> to vector<2x8xf32>
    %85 = vector.shape_cast %84 : vector<2x8xf32> to vector<2x8x1xf32>
    %86 = tpu.reciprocal %85 {approx = true} : vector<2x8x1xf32> -> vector<2x8x1xf32>
    %87 = vector.broadcast %86 : vector<2x8x1xf32> to vector<2x8x8xf32>
    %88 = arith.mulf %83, %87 : vector<2x8x8xf32>
    %89 = arith.truncf %88 : vector<2x8x8xf32> to vector<2x8x8xbf16>
    "tpu.trace_start"() <{level = 10 : i32, message = "bqk,bkd->bqd"}> : () -> ()
    %cst_37 = arith.constant dense<0.000000e+00> : vector<2x8x16xf32>
    %90 = tpu.matmul %89, %77, %cst_37 {dimension_numbers = #tpu.dot_dimension_numbers<[2], [1], [1], [2], [0, 0, 0, 1, 1, 2], [0], [0]>} : vector<2x8x8xbf16>, vector<2x8x16xbf16>, vector<2x8x16xf32> -> vector<2x8x16xf32>
    "tpu.trace_stop"() : () -> ()
    %91 = vector.extract_strided_slice %22 {offsets = [0, 0, 64], sizes = [2, 8, 16], strides = [1, 1, 1]} : vector<2x8x128xbf16> to vector<2x8x16xbf16>
    %92 = vector.extract_strided_slice %24 {offsets = [0, 0, 64], sizes = [2, 8, 16], strides = [1, 1, 1]} : vector<2x8x128xbf16> to vector<2x8x16xbf16>
    %93 = vector.extract_strided_slice %26 {offsets = [0, 0, 64], sizes = [2, 8, 16], strides = [1, 1, 1]} : vector<2x8x128xbf16> to vector<2x8x16xbf16>
    "tpu.trace_start"() <{level = 10 : i32, message = "bqd,bkd->bqk"}> : () -> ()
    %cst_38 = arith.constant dense<0.000000e+00> : vector<2x8x8xf32>
    %94 = tpu.matmul %91, %92, %cst_38 {dimension_numbers = #tpu.dot_dimension_numbers<[2], [2], [1], [1], [0, 0, 0, 1, 1, 1], [0], [0]>} : vector<2x8x16xbf16>, vector<2x8x16xbf16>, vector<2x8x8xf32> -> vector<2x8x8xf32>
    "tpu.trace_stop"() : () -> ()
    %cst_39 = arith.constant dense<0xFF800000> : vector<2x8xf32>
    %95 = vector.multi_reduction <maximumf>, %94, %cst_39 [2] : vector<2x8x8xf32> to vector<2x8xf32>
    %96 = vector.shape_cast %95 : vector<2x8xf32> to vector<2x8x1xf32>
    %97 = vector.broadcast %96 : vector<2x8x1xf32> to vector<2x8x8xf32>
    %98 = arith.subf %94, %97 : vector<2x8x8xf32>
    %99 = math.exp %98 : vector<2x8x8xf32>
    %cst_40 = arith.constant dense<0.000000e+00> : vector<2x8xf32>
    %100 = vector.multi_reduction <add>, %99, %cst_40 [2] : vector<2x8x8xf32> to vector<2x8xf32>
    %101 = vector.shape_cast %100 : vector<2x8xf32> to vector<2x8x1xf32>
    %102 = tpu.reciprocal %101 {approx = true} : vector<2x8x1xf32> -> vector<2x8x1xf32>
    %103 = vector.broadcast %102 : vector<2x8x1xf32> to vector<2x8x8xf32>
    %104 = arith.mulf %99, %103 : vector<2x8x8xf32>
    %105 = arith.truncf %104 : vector<2x8x8xf32> to vector<2x8x8xbf16>
    "tpu.trace_start"() <{level = 10 : i32, message = "bqk,bkd->bqd"}> : () -> ()
    %cst_41 = arith.constant dense<0.000000e+00> : vector<2x8x16xf32>
    %106 = tpu.matmul %105, %93, %cst_41 {dimension_numbers = #tpu.dot_dimension_numbers<[2], [1], [1], [2], [0, 0, 0, 1, 1, 2], [0], [0]>} : vector<2x8x8xbf16>, vector<2x8x16xbf16>, vector<2x8x16xf32> -> vector<2x8x16xf32>
    "tpu.trace_stop"() : () -> ()
    %107 = vector.extract_strided_slice %22 {offsets = [0, 0, 80], sizes = [2, 8, 16], strides = [1, 1, 1]} : vector<2x8x128xbf16> to vector<2x8x16xbf16>
    %108 = vector.extract_strided_slice %24 {offsets = [0, 0, 80], sizes = [2, 8, 16], strides = [1, 1, 1]} : vector<2x8x128xbf16> to vector<2x8x16xbf16>
    %109 = vector.extract_strided_slice %26 {offsets = [0, 0, 80], sizes = [2, 8, 16], strides = [1, 1, 1]} : vector<2x8x128xbf16> to vector<2x8x16xbf16>
    "tpu.trace_start"() <{level = 10 : i32, message = "bqd,bkd->bqk"}> : () -> ()
    %cst_42 = arith.constant dense<0.000000e+00> : vector<2x8x8xf32>
    %110 = tpu.matmul %107, %108, %cst_42 {dimension_numbers = #tpu.dot_dimension_numbers<[2], [2], [1], [1], [0, 0, 0, 1, 1, 1], [0], [0]>} : vector<2x8x16xbf16>, vector<2x8x16xbf16>, vector<2x8x8xf32> -> vector<2x8x8xf32>
    "tpu.trace_stop"() : () -> ()
    %cst_43 = arith.constant dense<0xFF800000> : vector<2x8xf32>
    %111 = vector.multi_reduction <maximumf>, %110, %cst_43 [2] : vector<2x8x8xf32> to vector<2x8xf32>
    %112 = vector.shape_cast %111 : vector<2x8xf32> to vector<2x8x1xf32>
    %113 = vector.broadcast %112 : vector<2x8x1xf32> to vector<2x8x8xf32>
    %114 = arith.subf %110, %113 : vector<2x8x8xf32>
    %115 = math.exp %114 : vector<2x8x8xf32>
    %cst_44 = arith.constant dense<0.000000e+00> : vector<2x8xf32>
    %116 = vector.multi_reduction <add>, %115, %cst_44 [2] : vector<2x8x8xf32> to vector<2x8xf32>
    %117 = vector.shape_cast %116 : vector<2x8xf32> to vector<2x8x1xf32>
    %118 = tpu.reciprocal %117 {approx = true} : vector<2x8x1xf32> -> vector<2x8x1xf32>
    %119 = vector.broadcast %118 : vector<2x8x1xf32> to vector<2x8x8xf32>
    %120 = arith.mulf %115, %119 : vector<2x8x8xf32>
    %121 = arith.truncf %120 : vector<2x8x8xf32> to vector<2x8x8xbf16>
    "tpu.trace_start"() <{level = 10 : i32, message = "bqk,bkd->bqd"}> : () -> ()
    %cst_45 = arith.constant dense<0.000000e+00> : vector<2x8x16xf32>
    %122 = tpu.matmul %121, %109, %cst_45 {dimension_numbers = #tpu.dot_dimension_numbers<[2], [1], [1], [2], [0, 0, 0, 1, 1, 2], [0], [0]>} : vector<2x8x8xbf16>, vector<2x8x16xbf16>, vector<2x8x16xf32> -> vector<2x8x16xf32>
    "tpu.trace_stop"() : () -> ()
    %123 = vector.extract_strided_slice %22 {offsets = [0, 0, 96], sizes = [2, 8, 16], strides = [1, 1, 1]} : vector<2x8x128xbf16> to vector<2x8x16xbf16>
    %124 = vector.extract_strided_slice %24 {offsets = [0, 0, 96], sizes = [2, 8, 16], strides = [1, 1, 1]} : vector<2x8x128xbf16> to vector<2x8x16xbf16>
    %125 = vector.extract_strided_slice %26 {offsets = [0, 0, 96], sizes = [2, 8, 16], strides = [1, 1, 1]} : vector<2x8x128xbf16> to vector<2x8x16xbf16>
    "tpu.trace_start"() <{level = 10 : i32, message = "bqd,bkd->bqk"}> : () -> ()
    %cst_46 = arith.constant dense<0.000000e+00> : vector<2x8x8xf32>
    %126 = tpu.matmul %123, %124, %cst_46 {dimension_numbers = #tpu.dot_dimension_numbers<[2], [2], [1], [1], [0, 0, 0, 1, 1, 1], [0], [0]>} : vector<2x8x16xbf16>, vector<2x8x16xbf16>, vector<2x8x8xf32> -> vector<2x8x8xf32>
    "tpu.trace_stop"() : () -> ()
    %cst_47 = arith.constant dense<0xFF800000> : vector<2x8xf32>
    %127 = vector.multi_reduction <maximumf>, %126, %cst_47 [2] : vector<2x8x8xf32> to vector<2x8xf32>
    %128 = vector.shape_cast %127 : vector<2x8xf32> to vector<2x8x1xf32>
    %129 = vector.broadcast %128 : vector<2x8x1xf32> to vector<2x8x8xf32>
    %130 = arith.subf %126, %129 : vector<2x8x8xf32>
    %131 = math.exp %130 : vector<2x8x8xf32>
    %cst_48 = arith.constant dense<0.000000e+00> : vector<2x8xf32>
    %132 = vector.multi_reduction <add>, %131, %cst_48 [2] : vector<2x8x8xf32> to vector<2x8xf32>
    %133 = vector.shape_cast %132 : vector<2x8xf32> to vector<2x8x1xf32>
    %134 = tpu.reciprocal %133 {approx = true} : vector<2x8x1xf32> -> vector<2x8x1xf32>
    %135 = vector.broadcast %134 : vector<2x8x1xf32> to vector<2x8x8xf32>
    %136 = arith.mulf %131, %135 : vector<2x8x8xf32>
    %137 = arith.truncf %136 : vector<2x8x8xf32> to vector<2x8x8xbf16>
    "tpu.trace_start"() <{level = 10 : i32, message = "bqk,bkd->bqd"}> : () -> ()
    %cst_49 = arith.constant dense<0.000000e+00> : vector<2x8x16xf32>
    %138 = tpu.matmul %137, %125, %cst_49 {dimension_numbers = #tpu.dot_dimension_numbers<[2], [1], [1], [2], [0, 0, 0, 1, 1, 2], [0], [0]>} : vector<2x8x8xbf16>, vector<2x8x16xbf16>, vector<2x8x16xf32> -> vector<2x8x16xf32>
    "tpu.trace_stop"() : () -> ()
    %139 = vector.extract_strided_slice %22 {offsets = [0, 0, 112], sizes = [2, 8, 16], strides = [1, 1, 1]} : vector<2x8x128xbf16> to vector<2x8x16xbf16>
    %140 = vector.extract_strided_slice %24 {offsets = [0, 0, 112], sizes = [2, 8, 16], strides = [1, 1, 1]} : vector<2x8x128xbf16> to vector<2x8x16xbf16>
    %141 = vector.extract_strided_slice %26 {offsets = [0, 0, 112], sizes = [2, 8, 16], strides = [1, 1, 1]} : vector<2x8x128xbf16> to vector<2x8x16xbf16>
    "tpu.trace_start"() <{level = 10 : i32, message = "bqd,bkd->bqk"}> : () -> ()
    %cst_50 = arith.constant dense<0.000000e+00> : vector<2x8x8xf32>
    %142 = tpu.matmul %139, %140, %cst_50 {dimension_numbers = #tpu.dot_dimension_numbers<[2], [2], [1], [1], [0, 0, 0, 1, 1, 1], [0], [0]>} : vector<2x8x16xbf16>, vector<2x8x16xbf16>, vector<2x8x8xf32> -> vector<2x8x8xf32>
    "tpu.trace_stop"() : () -> ()
    %cst_51 = arith.constant dense<0xFF800000> : vector<2x8xf32>
    %143 = vector.multi_reduction <maximumf>, %142, %cst_51 [2] : vector<2x8x8xf32> to vector<2x8xf32>
    %144 = vector.shape_cast %143 : vector<2x8xf32> to vector<2x8x1xf32>
    %145 = vector.broadcast %144 : vector<2x8x1xf32> to vector<2x8x8xf32>
    %146 = arith.subf %142, %145 : vector<2x8x8xf32>
    %147 = math.exp %146 : vector<2x8x8xf32>
    %cst_52 = arith.constant dense<0.000000e+00> : vector<2x8xf32>
    %148 = vector.multi_reduction <add>, %147, %cst_52 [2] : vector<2x8x8xf32> to vector<2x8xf32>
    %149 = vector.shape_cast %148 : vector<2x8xf32> to vector<2x8x1xf32>
    %150 = tpu.reciprocal %149 {approx = true} : vector<2x8x1xf32> -> vector<2x8x1xf32>
    %151 = vector.broadcast %150 : vector<2x8x1xf32> to vector<2x8x8xf32>
    %152 = arith.mulf %147, %151 : vector<2x8x8xf32>
    %153 = arith.truncf %152 : vector<2x8x8xf32> to vector<2x8x8xbf16>
    "tpu.trace_start"() <{level = 10 : i32, message = "bqk,bkd->bqd"}> : () -> ()
    %cst_53 = arith.constant dense<0.000000e+00> : vector<2x8x16xf32>
    %154 = tpu.matmul %153, %141, %cst_53 {dimension_numbers = #tpu.dot_dimension_numbers<[2], [1], [1], [2], [0, 0, 0, 1, 1, 2], [0], [0]>} : vector<2x8x8xbf16>, vector<2x8x16xbf16>, vector<2x8x16xf32> -> vector<2x8x16xf32>
    "tpu.trace_stop"() : () -> ()
    %155 = tpu.concatenate %42, %58, %74, %90, %106, %122, %138, %154 in 2 : vector<2x8x16xf32>, vector<2x8x16xf32>, vector<2x8x16xf32>, vector<2x8x16xf32>, vector<2x8x16xf32>, vector<2x8x16xf32>, vector<2x8x16xf32>, vector<2x8x16xf32> -> vector<2x8x128xf32>
    %156 = vector.shape_cast %155 : vector<2x8x128xf32> to vector<16x128xf32>
    %157 = arith.truncf %156 : vector<16x128xf32> to vector<16x128xbf16>
    %c0_54 = arith.constant 0 : index
    %c0_55 = arith.constant 0 : index
    %158 = vector.load %arg10[%c0_54, %c0_55] : memref<128x128xbf16, #tpu.memory_space<vmem>>, vector<128x128xbf16>
    %cst_56 = arith.constant dense<0.000000e+00> : vector<16x128xf32>
    %159 = tpu.matmul %157, %158, %cst_56 {dimension_numbers = #tpu.dot_dimension_numbers<[1], [0], [0], [1], [0, 0, 1, 1], [], []>} : vector<16x128xbf16>, vector<128x128xbf16>, vector<16x128xf32> -> vector<16x128xf32>
    %c0_57 = arith.constant 0 : index
    %c0_58 = arith.constant 0 : index
    %160 = vector.load %arg11[%c0_57, %c0_58] : memref<1x128xf32, #tpu.memory_space<vmem>>, vector<1x128xf32>
    %161 = vector.broadcast %160 : vector<1x128xf32> to vector<16x128xf32>
    %162 = arith.addf %159, %161 : vector<16x128xf32>
    %163 = vector.shape_cast %162 : vector<16x128xf32> to vector<2x8x128xf32>
    %c0_59 = arith.constant 0 : index
    %c0_60 = arith.constant 0 : index
    %c0_61 = arith.constant 0 : index
    %164 = vector.load %arg12[%c0_59, %c0_60, %c0_61] : memref<2x8x128xf32, #tpu.memory_space<vmem>>, vector<2x8x128xf32>
    tpu.vector_store %arg12[%c0_59, %c0_60, %c0_61], %163 {strides = array<i32>} : memref<2x8x128xf32, #tpu.memory_space<vmem>>, vector<2x8x128xf32>,
    return
  }
  func.func @transform_0(%arg0: i32) -> (i32, i32, i32) {
    %c0_i32 = arith.constant 0 : i32
    %c0_i32_0 = arith.constant 0 : i32
    %c0_i32_1 = arith.constant 0 : i32
    return %arg0, %c0_i32, %c0_i32_0 : i32, i32, i32
  }
  func.func @transform_1(%arg0: i32) -> (i32, i32, i32) {
    %c0_i32 = arith.constant 0 : i32
    %c0_i32_0 = arith.constant 0 : i32
    %c0_i32_1 = arith.constant 0 : i32
    return %arg0, %c0_i32, %c0_i32_0 : i32, i32, i32
  }
  func.func @transform_2(%arg0: i32) -> (i32, i32, i32) {
    %c0_i32 = arith.constant 0 : i32
    %c0_i32_0 = arith.constant 0 : i32
    %c0_i32_1 = arith.constant 0 : i32
    return %arg0, %c0_i32, %c0_i32_0 : i32, i32, i32
  }
  func.func @transform_3(%arg0: i32) -> (i32, i32) {
    %c0_i32 = arith.constant 0 : i32
    %c0_i32_0 = arith.constant 0 : i32
    %c0_i32_1 = arith.constant 0 : i32
    return %c0_i32, %c0_i32_0 : i32, i32
  }
  func.func @transform_4(%arg0: i32) -> (i32, i32) {
    %c0_i32 = arith.constant 0 : i32
    %c0_i32_0 = arith.constant 0 : i32
    %c0_i32_1 = arith.constant 0 : i32
    return %c0_i32, %c0_i32_0 : i32, i32
  }
  func.func @transform_5(%arg0: i32) -> (i32, i32) {
    %c0_i32 = arith.constant 0 : i32
    %c0_i32_0 = arith.constant 0 : i32
    %c0_i32_1 = arith.constant 0 : i32
    return %c0_i32, %c0_i32_0 : i32, i32
  }
  func.func @transform_6(%arg0: i32) -> (i32, i32) {
    %c0_i32 = arith.constant 0 : i32
    %c0_i32_0 = arith.constant 0 : i32
    %c0_i32_1 = arith.constant 0 : i32
    return %c0_i32, %c0_i32_0 : i32, i32
  }
  func.func @transform_7(%arg0: i32) -> (i32, i32) {
    %c0_i32 = arith.constant 0 : i32
    %c0_i32_0 = arith.constant 0 : i32
    %c0_i32_1 = arith.constant 0 : i32
    return %c0_i32, %c0_i32_0 : i32, i32
  }
  func.func @transform_8(%arg0: i32) -> (i32, i32) {
    %c0_i32 = arith.constant 0 : i32
    %c0_i32_0 = arith.constant 0 : i32
    %c0_i32_1 = arith.constant 0 : i32
    return %c0_i32, %c0_i32_0 : i32, i32
  }
  func.func @transform_9(%arg0: i32) -> (i32, i32) {
    %c0_i32 = arith.constant 0 : i32
    %c0_i32_0 = arith.constant 0 : i32
    %c0_i32_1 = arith.constant 0 : i32
    return %c0_i32, %c0_i32_0 : i32, i32
  }
  func.func @transform_10(%arg0: i32) -> (i32, i32) {
    %c0_i32 = arith.constant 0 : i32
    %c0_i32_0 = arith.constant 0 : i32
    %c0_i32_1 = arith.constant 0 : i32
    return %c0_i32, %c0_i32_0 : i32, i32
  }
  func.func @transform_11(%arg0: i32) -> (i32, i32, i32) {
    %c0_i32 = arith.constant 0 : i32
    %c0_i32_0 = arith.constant 0 : i32
    %c0_i32_1 = arith.constant 0 : i32
    return %arg0, %c0_i32, %c0_i32_0 : i32, i32, i32
  }
}

</mosaic_0001>

<llo_original>
// kernel: tpu_custom_call.1
$region0: #{tpu_custom_call.1}
  #allocation0 [shape = 'u32[]', space=smem, size = 0x4, offset = 0x4, fixed_abs, tag = 'smem constant byte address 0x4 - core index']
  #allocation1 [shape = 'u32[72,128]{1,0:T(1,128)}', space=vmem, size = 0x9000, scoped, tag = 'internal scratch']
  %s0 = inlined_call_operand.hbm [shape: bf16[2,8,128], index: 0, kind: input, shape index: {}]
  %s1 = inlined_call_operand.hbm [shape: bf16[2,8,128], index: 1, kind: input, shape index: {}]
  %s2 = inlined_call_operand.hbm [shape: bf16[2,8,128], index: 2, kind: input, shape index: {}]
  %s3 = inlined_call_operand.hbm [shape: bf16[128,128], index: 3, kind: input, shape index: {}]
  %s4 = inlined_call_operand.vmem [shape: f32[1,128], index: 4, kind: input, shape index: {}]
  %s5 = inlined_call_operand.hbm [shape: bf16[128,128], index: 5, kind: input, shape index: {}]
  %s6 = inlined_call_operand.vmem [shape: f32[1,128], index: 6, kind: input, shape index: {}]
  %s7 = inlined_call_operand.hbm [shape: bf16[128,128], index: 7, kind: input, shape index: {}]
  %s8 = inlined_call_operand.vmem [shape: f32[1,128], index: 8, kind: input, shape index: {}]
  %s9 = inlined_call_operand.hbm [shape: bf16[128,128], index: 9, kind: input, shape index: {}]
  %s10 = inlined_call_operand.vmem [shape: f32[1,128], index: 10, kind: input, shape index: {}]
  %s11 = inlined_call_operand.hbm [shape: f32[2,8,128], index: 11, kind: output, shape index: {}]
  %s12 = sld [smem:[#allocation0]]
  $region82: #{tpu_custom_call.1} parent=0
    _
  %s14 = ssub.s32 1, %s12
  %s15 = scalar_select 0, %s14, %s12
  $region1: #{tpu_custom_call.1} parent=0
    #allocation2 [shape = 'u8[4096]{0}', space=vmem, size = 0x1000, scoped, tag = 'input window, operand 0, single buffered']
    #allocation3 [shape = 's32[1]{0}', space=sflag, size = 0x4, scoped, tag = 'scoped memory for tpu_custom_call.1']
    #allocation4 [shape = 's32[1]{0}', space=sflag, size = 0x4, scoped, tag = 'scoped memory for tpu_custom_call.1']
    #allocation5 [shape = 'u8[4096]{0}', space=vmem, size = 0x1000, scoped, tag = 'input window, operand 1, single buffered']
    #allocation6 [shape = 's32[1]{0}', space=sflag, size = 0x4, scoped, tag = 'scoped memory for tpu_custom_call.1']
    #allocation7 [shape = 'u8[4096]{0}', space=vmem, size = 0x1000, scoped, tag = 'input window, operand 2, single buffered']
    #allocation8 [shape = 'u8[32768]{0}', space=vmem, size = 0x8000, scoped, tag = 'input window, operand 3, single buffered']
    #allocation9 [shape = 's32[1]{0}', space=sflag, size = 0x4, scoped, tag = 'scoped memory for tpu_custom_call.1']
    #allocation10 [shape = 'u8[32768]{0}', space=vmem, size = 0x8000, scoped, tag = 'input window, operand 5, single buffered']
    #allocation11 [shape = 'u8[32768]{0}', space=vmem, size = 0x8000, scoped, tag = 'input window, operand 7, single buffered']
    #allocation12 [shape = 's32[1]{0}', space=sflag, size = 0x4, scoped, tag = 'scoped memory for tpu_custom_call.1']
    #allocation13 [shape = 'u8[32768]{0}', space=vmem, size = 0x8000, scoped, tag = 'input window, operand 9, single buffered']
    #allocation14 [shape = 'u8[8192]{0}', space=vmem, size = 0x2000, scoped, tag = 'output window, operand 0, single buffered']
    %16 = vsyncpa [#allocation3], 0
    %17 = vsyncpa [#allocation6], 0
    %18 = vsyncpa [#allocation9], 0
    %19 = vsyncpa [#allocation12], 0
    %20 = vsyncpa [#allocation4], 0
    // Predicated region
    $region2: #{tpu_custom_call.1} parent=1 // pred_check
      _
    $region3: #{tpu_custom_call.1} parent=1 // pred_check_branch
      %22 = sbr.rel (0) target = $region5
    $region4: #{tpu_custom_call.1} parent=1 // pred_region
      %24 = vsyncadd [#allocation3], 0
      %s25 = sshll.u32 %s0, 4
      %s26 = int_to_ptr.hbm [resolvable:$true] %s25
      %s27 = sshll.u32 [#allocation2], 4
      %s28 = int_to_ptr.vmem [resolvable:$true] %s27
      %33 = dma.hbm_to_vmem [thread:$0]  %s26, 128, %s28, [#allocation3], 64, 64, 4
    $region5: #{tpu_custom_call.1} parent=1 // pred_fallthru
      _
    // Predicated region
    $region6: #{tpu_custom_call.1} parent=1 // pred_check
      _
    $region7: #{tpu_custom_call.1} parent=1 // pred_check_branch
      %35 = sbr.rel (0) target = $region9
    $region8: #{tpu_custom_call.1} parent=1 // pred_region
      %37 = vsyncadd [#allocation6], 0
      %s38 = sshll.u32 %s1, 4
      %s39 = int_to_ptr.hbm [resolvable:$true] %s38
      %s40 = sshll.u32 [#allocation5], 4
      %s41 = int_to_ptr.vmem [resolvable:$true] %s40
      %46 = dma.hbm_to_vmem [thread:$0]  %s39, 128, %s41, [#allocation6], 64, 64, 4
    $region9: #{tpu_custom_call.1} parent=1 // pred_fallthru
      _
    // Predicated region
    $region10: #{tpu_custom_call.1} parent=1 // pred_check
      _
    $region11: #{tpu_custom_call.1} parent=1 // pred_check_branch
      %48 = sbr.rel (0) target = $region13
    $region12: #{tpu_custom_call.1} parent=1 // pred_region
      %50 = vsyncadd [#allocation6], 0
      %s51 = sshll.u32 %s2, 4
      %s52 = int_to_ptr.hbm [resolvable:$true] %s51
      %s53 = sshll.u32 [#allocation7], 4
      %s54 = int_to_ptr.vmem [resolvable:$true] %s53
      %59 = dma.hbm_to_vmem [thread:$0]  %s52, 128, %s54, [#allocation6], 64, 64, 4
    $region13: #{tpu_custom_call.1} parent=1 // pred_fallthru
      _
    // Predicated region
    $region14: #{tpu_custom_call.1} parent=1 // pred_check
      _
    $region15: #{tpu_custom_call.1} parent=1 // pred_check_branch
      %61 = sbr.rel (0) target = $region17
    $region16: #{tpu_custom_call.1} parent=1 // pred_region
      %63 = vsyncadd [#allocation9], 0
      %s64 = sshll.u32 %s3, 4
      %s65 = int_to_ptr.hbm [resolvable:$true] %s64
      %s66 = sshll.u32 [#allocation8], 4
      %s67 = int_to_ptr.vmem [resolvable:$true] %s66
      %72 = dma.hbm_to_vmem [thread:$0]  %s65, 1024, %s67, [#allocation9], 64, 64, 4
    $region17: #{tpu_custom_call.1} parent=1 // pred_fallthru
      _
    // Predicated region
    $region18: #{tpu_custom_call.1} parent=1 // pred_check
      _
    $region19: #{tpu_custom_call.1} parent=1 // pred_check_branch
      %74 = sbr.rel (0) target = $region21
    $region20: #{tpu_custom_call.1} parent=1 // pred_region
      _
    $region21: #{tpu_custom_call.1} parent=1 // pred_fallthru
      _
    // Predicated region
    $region22: #{tpu_custom_call.1} parent=1 // pred_check
      _
    $region23: #{tpu_custom_call.1} parent=1 // pred_check_branch
      %76 = sbr.rel (0) target = $region25
    $region24: #{tpu_custom_call.1} parent=1 // pred_region
      %78 = vsyncadd [#allocation9], 0
      %s79 = sshll.u32 %s5, 4
      %s80 = int_to_ptr.hbm [resolvable:$true] %s79
      %s81 = sshll.u32 [#allocation10], 4
      %s82 = int_to_ptr.vmem [resolvable:$true] %s81
      %87 = dma.hbm_to_vmem [thread:$0]  %s80, 1024, %s82, [#allocation9], 64, 64, 4
    $region25: #{tpu_custom_call.1} parent=1 // pred_fallthru
      _
    // Predicated region
    $region26: #{tpu_custom_call.1} parent=1 // pred_check
      _
    $region27: #{tpu_custom_call.1} parent=1 // pred_check_branch
      %89 = sbr.rel (0) target = $region29
    $region28: #{tpu_custom_call.1} parent=1 // pred_region
      _
    $region29: #{tpu_custom_call.1} parent=1 // pred_fallthru
      _
    // Predicated region
    $region30: #{tpu_custom_call.1} parent=1 // pred_check
      _
    $region31: #{tpu_custom_call.1} parent=1 // pred_check_branch
      %91 = sbr.rel (0) target = $region33
    $region32: #{tpu_custom_call.1} parent=1 // pred_region
      %93 = vsyncadd [#allocation12], 0
      %s94 = sshll.u32 %s7, 4
      %s95 = int_to_ptr.hbm [resolvable:$true] %s94
      %s96 = sshll.u32 [#allocation11], 4
      %s97 = int_to_ptr.vmem [resolvable:$true] %s96
      %102 = dma.hbm_to_vmem [thread:$0]  %s95, 1024, %s97, [#allocation12], 64, 64, 4
    $region33: #{tpu_custom_call.1} parent=1 // pred_fallthru
      _
    // Predicated region
    $region34: #{tpu_custom_call.1} parent=1 // pred_check
      _
    $region35: #{tpu_custom_call.1} parent=1 // pred_check_branch
      %104 = sbr.rel (0) target = $region37
    $region36: #{tpu_custom_call.1} parent=1 // pred_region
      _
    $region37: #{tpu_custom_call.1} parent=1 // pred_fallthru
      _
    // Predicated region
    $region38: #{tpu_custom_call.1} parent=1 // pred_check
      _
    $region39: #{tpu_custom_call.1} parent=1 // pred_check_branch
      %106 = sbr.rel (0) target = $region41
    $region40: #{tpu_custom_call.1} parent=1 // pred_region
      %108 = vsyncadd [#allocation12], 0
      %s109 = sshll.u32 %s9, 4
      %s110 = int_to_ptr.hbm [resolvable:$true] %s109
      %s111 = sshll.u32 [#allocation13], 4
      %s112 = int_to_ptr.vmem [resolvable:$true] %s111
      %117 = dma.hbm_to_vmem [thread:$0]  %s110, 1024, %s112, [#allocation12], 64, 64, 4
    $region41: #{tpu_custom_call.1} parent=1 // pred_fallthru
      _
    // Predicated region
    $region42: #{tpu_custom_call.1} parent=1 // pred_check
      _
    $region43: #{tpu_custom_call.1} parent=1 // pred_check_branch
      %119 = sbr.rel (0) target = $region45
    $region44: #{tpu_custom_call.1} parent=1 // pred_region
      _
    $region45: #{tpu_custom_call.1} parent=1 // pred_fallthru
      _
    // Predicated region
    $region46: #{tpu_custom_call.1} parent=1 // pred_check
      _
    $region47: #{tpu_custom_call.1} parent=1 // pred_check_branch
      %121 = sbr.rel (0) target = $region49
    $region48: #{tpu_custom_call.1} parent=1 // pred_region
      %123 = dma.done [#allocation3], 128
    $region49: #{tpu_custom_call.1} parent=1 // pred_fallthru
      _
    // Predicated region
    $region50: #{tpu_custom_call.1} parent=1 // pred_check
      _
    $region51: #{tpu_custom_call.1} parent=1 // pred_check_branch
      %125 = sbr.rel (0) target = $region53
    $region52: #{tpu_custom_call.1} parent=1 // pred_region
      %127 = dma.done [#allocation6], 128
    $region53: #{tpu_custom_call.1} parent=1 // pred_fallthru
      _
    // Predicated region
    $region54: #{tpu_custom_call.1} parent=1 // pred_check
      _
    $region55: #{tpu_custom_call.1} parent=1 // pred_check_branch
      %129 = sbr.rel (0) target = $region57
    $region56: #{tpu_custom_call.1} parent=1 // pred_region
      %131 = dma.done [#allocation6], 128
    $region57: #{tpu_custom_call.1} parent=1 // pred_fallthru
      _
    // Predicated region
    $region58: #{tpu_custom_call.1} parent=1 // pred_check
      _
    $region59: #{tpu_custom_call.1} parent=1 // pred_check_branch
      %133 = sbr.rel (0) target = $region61
    $region60: #{tpu_custom_call.1} parent=1 // pred_region
      %135 = dma.done [#allocation9], 1024
    $region61: #{tpu_custom_call.1} parent=1 // pred_fallthru
      _
    // Predicated region
    $region62: #{tpu_custom_call.1} parent=1 // pred_check
      _
    $region63: #{tpu_custom_call.1} parent=1 // pred_check_branch
      %137 = sbr.rel (0) target = $region65
    $region64: #{tpu_custom_call.1} parent=1 // pred_region
      %139 = dma.done [#allocation9], 1024
    $region65: #{tpu_custom_call.1} parent=1 // pred_fallthru
      _
    // Predicated region
    $region66: #{tpu_custom_call.1} parent=1 // pred_check
      _
    $region67: #{tpu_custom_call.1} parent=1 // pred_check_branch
      %141 = sbr.rel (0) target = $region69
    $region68: #{tpu_custom_call.1} parent=1 // pred_region
      %143 = dma.done [#allocation12], 1024
    $region69: #{tpu_custom_call.1} parent=1 // pred_fallthru
      _
    // Predicated region
    $region70: #{tpu_custom_call.1} parent=1 // pred_check
      _
    $region71: #{tpu_custom_call.1} parent=1 // pred_check_branch
      %145 = sbr.rel (0) target = $region73
    $region72: #{tpu_custom_call.1} parent=1 // pred_region
      %147 = dma.done [#allocation12], 1024
    $region73: #{tpu_custom_call.1} parent=1 // pred_fallthru
      _
    %v149 = vld [vmem:[#allocation2] sm:$0xf]
    %v150 = vld [vmem:[#allocation2 + $0x4] sm:$0xf]
    %v151 = vld [vmem:[#allocation5] sm:$0xf]
    %v152 = vld [vmem:[#allocation5 + $0x4] sm:$0xf]
    %v153 = vld [vmem:[#allocation7] sm:$0xf]
    %v154 = vld [vmem:[#allocation7 + $0x4] sm:$0xf]
    %v155 = vld [vmem:[#allocation8] sm:$0xf]
    %v156 = vld [vmem:[#allocation8 + $0x4] sm:$0xf]
    %v157 = vld [vmem:[#allocation8 + $0x8] sm:$0xf]
    %v158 = vld [vmem:[#allocation8 + $0xc] sm:$0xf]
    %v159 = vld [vmem:[#allocation8 + $0x10] sm:$0xf]
    %v160 = vld [vmem:[#allocation8 + $0x14] sm:$0xf]
    %v161 = vld [vmem:[#allocation8 + $0x18] sm:$0xf]
    %v162 = vld [vmem:[#allocation8 + $0x1c] sm:$0xf]
    %v163 = vld [vmem:[#allocation8 + $0x20] sm:$0xf]
    %v164 = vld [vmem:[#allocation8 + $0x24] sm:$0xf]
    %v165 = vld [vmem:[#allocation8 + $0x28] sm:$0xf]
    %v166 = vld [vmem:[#allocation8 + $0x2c] sm:$0xf]
    %v167 = vld [vmem:[#allocation8 + $0x30] sm:$0xf]
    %v168 = vld [vmem:[#allocation8 + $0x34] sm:$0xf]
    %v169 = vld [vmem:[#allocation8 + $0x38] sm:$0xf]
    %v170 = vld [vmem:[#allocation8 + $0x3c] sm:$0xf]
    %v171 = vld [vmem:[%s4] sm:$0x1]
    %v173 = vperm.slane %v171, 0
    %v177 = vunpack.c.l.b16 %v149
    %v178 = vunpack.c.l.b16 %v150
    %v179 = vpack.c.b16 %v178, %v177
    %v197 = vunpack.c.l.b16 %v155
    %v198 = vunpack.c.l.b16 %v156
    %v199 = vunpack.c.l.b16 %v157
    %v200 = vunpack.c.l.b16 %v158
    %v201 = vunpack.c.l.b16 %v159
    %v202 = vunpack.c.l.b16 %v160
    %v203 = vunpack.c.l.b16 %v161
    %v204 = vunpack.c.l.b16 %v162
    %v205 = vunpack.c.l.b16 %v163
    %v206 = vunpack.c.l.b16 %v164
    %v207 = vunpack.c.l.b16 %v165
    %v208 = vunpack.c.l.b16 %v166
    %v209 = vunpack.c.l.b16 %v167
    %v210 = vunpack.c.l.b16 %v168
    %v211 = vunpack.c.l.b16 %v169
    %v212 = vunpack.c.l.b16 %v170
    %v213 = vpack.c.b16 %v198, %v197
    %v214 = vpack.c.b16 %v200, %v199
    %v215 = vpack.c.b16 %v202, %v201
    %v216 = vpack.c.b16 %v204, %v203
    %v217 = vpack.c.b16 %v206, %v205
    %v218 = vpack.c.b16 %v208, %v207
    %v219 = vpack.c.b16 %v210, %v209
    %v220 = vpack.c.b16 %v212, %v211
    %229 = vmatpush.bf16.msra.mxu0 %v220
    %230 = vmatpush.bf16.msra.mxu0 %v219
    %231 = vmatpush.bf16.msra.mxu0 %v218
    %232 = vmatpush.bf16.msra.mxu0 %v217
    %233 = vmatpush.bf16.msra.mxu0 %v216
    %234 = vmatpush.bf16.msra.mxu0 %v215
    %235 = vmatpush.bf16.msra.mxu0 %v214
    %236 = vmatpush.bf16.msra.mxu0 %v213
    %237 = vmatmul.bf16.gmra.mxu0 %v179
    %v238 = vpop.f32.mrf.mxu0
    %v239 = vadd.f32 %v173, %v238
    %v240 = vpop.f32.mrf.mxu0
    %v241 = vadd.f32 %v173, %v240
    %242 = vdwg.mxu0
    %v243 = vld [vmem:[#allocation10] sm:$0xf]
    %v244 = vld [vmem:[#allocation10 + $0x4] sm:$0xf]
    %v245 = vld [vmem:[#allocation10 + $0x8] sm:$0xf]
    %v246 = vld [vmem:[#allocation10 + $0xc] sm:$0xf]
    %v247 = vld [vmem:[#allocation10 + $0x10] sm:$0xf]
    %v248 = vld [vmem:[#allocation10 + $0x14] sm:$0xf]
    %v249 = vld [vmem:[#allocation10 + $0x18] sm:$0xf]
    %v250 = vld [vmem:[#allocation10 + $0x1c] sm:$0xf]
    %v251 = vld [vmem:[#allocation10 + $0x20] sm:$0xf]
    %v252 = vld [vmem:[#allocation10 + $0x24] sm:$0xf]
    %v253 = vld [vmem:[#allocation10 + $0x28] sm:$0xf]
    %v254 = vld [vmem:[#allocation10 + $0x2c] sm:$0xf]
    %v255 = vld [vmem:[#allocation10 + $0x30] sm:$0xf]
    %v256 = vld [vmem:[#allocation10 + $0x34] sm:$0xf]
    %v257 = vld [vmem:[#allocation10 + $0x38] sm:$0xf]
    %v258 = vld [vmem:[#allocation10 + $0x3c] sm:$0xf]
    %v259 = vld [vmem:[%s6] sm:$0x1]
    %v261 = vperm.slane %v259, 0
    %v265 = vunpack.c.l.b16 %v151
    %v266 = vunpack.c.l.b16 %v152
    %v267 = vpack.c.b16 %v266, %v265
    %v285 = vunpack.c.l.b16 %v243
    %v286 = vunpack.c.l.b16 %v244
    %v287 = vunpack.c.l.b16 %v245
    %v288 = vunpack.c.l.b16 %v246
    %v289 = vunpack.c.l.b16 %v247
    %v290 = vunpack.c.l.b16 %v248
    %v291 = vunpack.c.l.b16 %v249
    %v292 = vunpack.c.l.b16 %v250
    %v293 = vunpack.c.l.b16 %v251
    %v294 = vunpack.c.l.b16 %v252
    %v295 = vunpack.c.l.b16 %v253
    %v296 = vunpack.c.l.b16 %v254
    %v297 = vunpack.c.l.b16 %v255
    %v298 = vunpack.c.l.b16 %v256
    %v299 = vunpack.c.l.b16 %v257
    %v300 = vunpack.c.l.b16 %v258
    %v301 = vpack.c.b16 %v286, %v285
    %v302 = vpack.c.b16 %v288, %v287
    %v303 = vpack.c.b16 %v290, %v289
    %v304 = vpack.c.b16 %v292, %v291
    %v305 = vpack.c.b16 %v294, %v293
    %v306 = vpack.c.b16 %v296, %v295
    %v307 = vpack.c.b16 %v298, %v297
    %v308 = vpack.c.b16 %v300, %v299
    %317 = vmatpush.bf16.msra.mxu0 %v308
    %318 = vmatpush.bf16.msra.mxu0 %v307
    %319 = vmatpush.bf16.msra.mxu0 %v306
    %320 = vmatpush.bf16.msra.mxu0 %v305
    %321 = vmatpush.bf16.msra.mxu0 %v304
    %322 = vmatpush.bf16.msra.mxu0 %v303
    %323 = vmatpush.bf16.msra.mxu0 %v302
    %324 = vmatpush.bf16.msra.mxu0 %v301
    %325 = vmatmul.bf16.gmra.mxu0 %v267
    %v326 = vpop.f32.mrf.mxu0
    %v327 = vadd.f32 %v261, %v326
    %v328 = vpop.f32.mrf.mxu0
    %v329 = vadd.f32 %v261, %v328
    %330 = vdwg.mxu0
    %v331 = vld [vmem:[#allocation11] sm:$0xf]
    %v332 = vld [vmem:[#allocation11 + $0x4] sm:$0xf]
    %v333 = vld [vmem:[#allocation11 + $0x8] sm:$0xf]
    %v334 = vld [vmem:[#allocation11 + $0xc] sm:$0xf]
    %v335 = vld [vmem:[#allocation11 + $0x10] sm:$0xf]
    %v336 = vld [vmem:[#allocation11 + $0x14] sm:$0xf]
    %v337 = vld [vmem:[#allocation11 + $0x18] sm:$0xf]
    %v338 = vld [vmem:[#allocation11 + $0x1c] sm:$0xf]
    %v339 = vld [vmem:[#allocation11 + $0x20] sm:$0xf]
    %v340 = vld [vmem:[#allocation11 + $0x24] sm:$0xf]
    %v341 = vld [vmem:[#allocation11 + $0x28] sm:$0xf]
    %v342 = vld [vmem:[#allocation11 + $0x2c] sm:$0xf]
    %v343 = vld [vmem:[#allocation11 + $0x30] sm:$0xf]
    %v344 = vld [vmem:[#allocation11 + $0x34] sm:$0xf]
    %v345 = vld [vmem:[#allocation11 + $0x38] sm:$0xf]
    %v346 = vld [vmem:[#allocation11 + $0x3c] sm:$0xf]
    %v347 = vld [vmem:[%s8] sm:$0x1]
    %v349 = vperm.slane %v347, 0
    %v353 = vunpack.c.l.b16 %v153
    %v354 = vunpack.c.l.b16 %v154
    %v355 = vpack.c.b16 %v354, %v353
    %v373 = vunpack.c.l.b16 %v331
    %v374 = vunpack.c.l.b16 %v332
    %v375 = vunpack.c.l.b16 %v333
    %v376 = vunpack.c.l.b16 %v334
    %v377 = vunpack.c.l.b16 %v335
    %v378 = vunpack.c.l.b16 %v336
    %v379 = vunpack.c.l.b16 %v337
    %v380 = vunpack.c.l.b16 %v338
    %v381 = vunpack.c.l.b16 %v339
    %v382 = vunpack.c.l.b16 %v340
    %v383 = vunpack.c.l.b16 %v341
    %v384 = vunpack.c.l.b16 %v342
    %v385 = vunpack.c.l.b16 %v343
    %v386 = vunpack.c.l.b16 %v344
    %v387 = vunpack.c.l.b16 %v345
    %v388 = vunpack.c.l.b16 %v346
    %v389 = vpack.c.b16 %v374, %v373
    %v390 = vpack.c.b16 %v376, %v375
    %v391 = vpack.c.b16 %v378, %v377
    %v392 = vpack.c.b16 %v380, %v379
    %v393 = vpack.c.b16 %v382, %v381
    %v394 = vpack.c.b16 %v384, %v383
    %v395 = vpack.c.b16 %v386, %v385
    %v396 = vpack.c.b16 %v388, %v387
    %405 = vmatpush.bf16.msra.mxu0 %v396
    %406 = vmatpush.bf16.msra.mxu0 %v395
    %407 = vmatpush.bf16.msra.mxu0 %v394
    %408 = vmatpush.bf16.msra.mxu0 %v393
    %409 = vmatpush.bf16.msra.mxu0 %v392
    %410 = vmatpush.bf16.msra.mxu0 %v391
    %411 = vmatpush.bf16.msra.mxu0 %v390
    %412 = vmatpush.bf16.msra.mxu0 %v389
    %413 = vmatmul.bf16.gmra.mxu0 %v355
    %v414 = vpop.f32.mrf.mxu0
    %v415 = vadd.f32 %v349, %v414
    %v416 = vpop.f32.mrf.mxu0
    %v417 = vadd.f32 %v349, %v416
    %418 = vdwg.mxu0
    %v419 = vpack.c.bf16 %v239, %v239
    %v420 = vpack.c.bf16 %v241, %v241
    %v421 = vpack.c.bf16 %v327, %v327
    %v422 = vpack.c.bf16 %v329, %v329
    %v423 = vpack.c.bf16 %v415, %v415
    %v424 = vpack.c.bf16 %v417, %v417
    %vm425 = vcmask 130048
    %v427 = vsel %vm425, %v419, 0
    %v430 = vsel %vm425, %v421, 0
    %432 = vmatpush.bf16.xpose.msra.mxu0 0
    %433 = vmatpush.bf16.xpose.msra.mxu0 0
    %434 = vmatpush.bf16.xpose.msra.mxu0 0
    %435 = vmatpush.bf16.xpose.msra.mxu0 0
    %436 = vmatpush.bf16.xpose.msra.mxu0 0
    %437 = vmatpush.bf16.xpose.msra.mxu0 0
    %438 = vmatpush.bf16.xpose.msra.mxu0 0
    %439 = vmatpush.bf16.xpose.msra.mxu0 %v430
    %440 = vmatmul.bf16.gmra.mxu0 %v427
    %v441 = vpop.f32.mrf.mxu0
    %v442 = vadd.f32 0.0, %v441
    %v443 = vpop.f32.mrf.mxu0
    %444 = vdwg.mxu0
    %v446 = vsel %vm425, %v420, 0
    %v449 = vsel %vm425, %v422, 0
    %451 = vmatpush.bf16.xpose.msra.mxu0 0
    %452 = vmatpush.bf16.xpose.msra.mxu0 0
    %453 = vmatpush.bf16.xpose.msra.mxu0 0
    %454 = vmatpush.bf16.xpose.msra.mxu0 0
    %455 = vmatpush.bf16.xpose.msra.mxu0 0
    %456 = vmatpush.bf16.xpose.msra.mxu0 0
    %457 = vmatpush.bf16.xpose.msra.mxu0 0
    %458 = vmatpush.bf16.xpose.msra.mxu0 %v449
    %459 = vmatmul.bf16.gmra.mxu0 %v446
    %v460 = vpop.f32.mrf.mxu0
    %v461 = vadd.f32 0.0, %v460
    %v462 = vpop.f32.mrf.mxu0
    %463 = vdwg.mxu0
    %vm464 = vcmask 64512
    %v465 = vsel %vm464, %v442, -inf
    %466 = vmax.xlane.f32.xlu0 %v465
    %v467 = vpop.xlane.xlu0 %466
    %v468 = vsel %vm464, %v461, -inf
    %469 = vmax.xlane.f32.xlu0 %v468
    %v470 = vpop.xlane.xlu0 %469
    %v471 = vsub.f32 %v442, %v467
    %v472 = vsub.f32 %v461, %v470
    %v473 = vmul.f32 %v471, 1.442695
    %v474 = vpow.pop %v473
    %v475 = vmul.f32 %v472, 1.442695
    %v476 = vpow.pop %v475
    %v477 = vsel %vm464, %v474, 0.0
    %478 = vadd.xlane.f32.xlu0 %v477
    %v479 = vpop.xlane.xlu0 %478
    %v480 = vsel %vm464, %v476, 0.0
    %481 = vadd.xlane.f32.xlu0 %v480
    %v482 = vpop.xlane.xlu0 %481
    %v483 = vrcp.pop %v479
    %v484 = vrcp.pop %v482
    %v485 = vmul.f32 %v474, %v483
    %v486 = vmul.f32 %v476, %v484
    %v487 = vpack.c.bf16 %v485, %v485
    %v488 = vpack.c.bf16 %v486, %v486
    %v490 = vsel %vm464, %v487, 0
    %vm492 = vcmask 1043456
    %v494 = vsel %vm492, %v423, 0
    %496 = vmatpush.bf16.msra.mxu0 0
    %497 = vmatpush.bf16.msra.mxu0 0
    %498 = vmatpush.bf16.msra.mxu0 0
    %499 = vmatpush.bf16.msra.mxu0 0
    %500 = vmatpush.bf16.msra.mxu0 0
    %501 = vmatpush.bf16.msra.mxu0 0
    %502 = vmatpush.bf16.msra.mxu0 0
    %503 = vmatpush.bf16.msra.mxu0 %v494
    %504 = vmatmul.bf16.gmra.mxu0 %v490
    %v505 = vpop.f32.mrf.mxu0
    %v506 = vadd.f32 0.0, %v505
    %v507 = vpop.f32.mrf.mxu0
    %508 = vdwg.mxu0
    %v510 = vsel %vm464, %v488, 0
    %v513 = vsel %vm492, %v424, 0
    %515 = vmatpush.bf16.msra.mxu0 0
    %516 = vmatpush.bf16.msra.mxu0 0
    %517 = vmatpush.bf16.msra.mxu0 0
    %518 = vmatpush.bf16.msra.mxu0 0
    %519 = vmatpush.bf16.msra.mxu0 0
    %520 = vmatpush.bf16.msra.mxu0 0
    %521 = vmatpush.bf16.msra.mxu0 0
    %522 = vmatpush.bf16.msra.mxu0 %v513
    %523 = vmatmul.bf16.gmra.mxu0 %v510
    %v524 = vpop.f32.mrf.mxu0
    %v525 = vadd.f32 0.0, %v524
    %v526 = vpop.f32.mrf.mxu0
    %527 = vdwg.mxu0
    %v529 = vunpack.c.l.b16 %v419
    %v530 = vpack.c.b16 %v529, %v529
    %531 = vrot.lane.b32.xlu0 %v530, 112
    %v532 = vpop.permute.xlu0 %531
    %v534 = vunpack.c.l.b16 %v421
    %v535 = vpack.c.b16 %v534, %v534
    %536 = vrot.lane.b32.xlu0 %v535, 112
    %v537 = vpop.permute.xlu0 %536
    %v539 = vsel %vm425, %v532, 0
    %v542 = vsel %vm425, %v537, 0
    %544 = vmatpush.bf16.xpose.msra.mxu0 0
    %545 = vmatpush.bf16.xpose.msra.mxu0 0
    %546 = vmatpush.bf16.xpose.msra.mxu0 0
    %547 = vmatpush.bf16.xpose.msra.mxu0 0
    %548 = vmatpush.bf16.xpose.msra.mxu0 0
    %549 = vmatpush.bf16.xpose.msra.mxu0 0
    %550 = vmatpush.bf16.xpose.msra.mxu0 0
    %551 = vmatpush.bf16.xpose.msra.mxu0 %v542
    %552 = vmatmul.bf16.gmra.mxu0 %v539
    %v553 = vpop.f32.mrf.mxu0
    %v554 = vadd.f32 0.0, %v553
    %v555 = vpop.f32.mrf.mxu0
    %556 = vdwg.mxu0
    %v558 = vunpack.c.l.b16 %v420
    %v559 = vpack.c.b16 %v558, %v558
    %560 = vrot.lane.b32.xlu0 %v559, 112
    %v561 = vpop.permute.xlu0 %560
    %v563 = vunpack.c.l.b16 %v422
    %v564 = vpack.c.b16 %v563, %v563
    %565 = vrot.lane.b32.xlu0 %v564, 112
    %v566 = vpop.permute.xlu0 %565
    %v568 = vsel %vm425, %v561, 0
    %v571 = vsel %vm425, %v566, 0
    %573 = vmatpush.bf16.xpose.msra.mxu0 0
    %574 = vmatpush.bf16.xpose.msra.mxu0 0
    %575 = vmatpush.bf16.xpose.msra.mxu0 0
    %576 = vmatpush.bf16.xpose.msra.mxu0 0
    %577 = vmatpush.bf16.xpose.msra.mxu0 0
    %578 = vmatpush.bf16.xpose.msra.mxu0 0
    %579 = vmatpush.bf16.xpose.msra.mxu0 0
    %580 = vmatpush.bf16.xpose.msra.mxu0 %v571
    %581 = vmatmul.bf16.gmra.mxu0 %v568
    %v582 = vpop.f32.mrf.mxu0
    %v583 = vadd.f32 0.0, %v582
    %v584 = vpop.f32.mrf.mxu0
    %585 = vdwg.mxu0
    %v586 = vsel %vm464, %v554, -inf
    %587 = vmax.xlane.f32.xlu0 %v586
    %v588 = vpop.xlane.xlu0 %587
    %v589 = vsel %vm464, %v583, -inf
    %590 = vmax.xlane.f32.xlu0 %v589
    %v591 = vpop.xlane.xlu0 %590
    %v592 = vsub.f32 %v554, %v588
    %v593 = vsub.f32 %v583, %v591
    %v594 = vmul.f32 %v592, 1.442695
    %v595 = vpow.pop %v594
    %v596 = vmul.f32 %v593, 1.442695
    %v597 = vpow.pop %v596
    %v598 = vsel %vm464, %v595, 0.0
    %599 = vadd.xlane.f32.xlu0 %v598
    %v600 = vpop.xlane.xlu0 %599
    %v601 = vsel %vm464, %v597, 0.0
    %602 = vadd.xlane.f32.xlu0 %v601
    %v603 = vpop.xlane.xlu0 %602
    %v604 = vrcp.pop %v600
    %v605 = vrcp.pop %v603
    %v606 = vmul.f32 %v595, %v604
    %v607 = vmul.f32 %v597, %v605
    %v608 = vpack.c.bf16 %v606, %v606
    %v609 = vpack.c.bf16 %v607, %v607
    %v611 = vunpack.c.l.b16 %v423
    %v612 = vpack.c.b16 %v611, %v611
    %613 = vrot.lane.b32.xlu0 %v612, 112
    %v614 = vpop.permute.xlu0 %613
    %v616 = vsel %vm464, %v608, 0
    %v619 = vsel %vm492, %v614, 0
    %621 = vmatpush.bf16.msra.mxu0 0
    %622 = vmatpush.bf16.msra.mxu0 0
    %623 = vmatpush.bf16.msra.mxu0 0
    %624 = vmatpush.bf16.msra.mxu0 0
    %625 = vmatpush.bf16.msra.mxu0 0
    %626 = vmatpush.bf16.msra.mxu0 0
    %627 = vmatpush.bf16.msra.mxu0 0
    %628 = vmatpush.bf16.msra.mxu0 %v619
    %629 = vmatmul.bf16.gmra.mxu0 %v616
    %v630 = vpop.f32.mrf.mxu0
    %v631 = vadd.f32 0.0, %v630
    %v632 = vpop.f32.mrf.mxu0
    %633 = vdwg.mxu0
    %v635 = vunpack.c.l.b16 %v424
    %v636 = vpack.c.b16 %v635, %v635
    %637 = vrot.lane.b32.xlu0 %v636, 112
    %v638 = vpop.permute.xlu0 %637
    %v640 = vsel %vm464, %v609, 0
    %v643 = vsel %vm492, %v638, 0
    %645 = vmatpush.bf16.msra.mxu0 0
    %646 = vmatpush.bf16.msra.mxu0 0
    %647 = vmatpush.bf16.msra.mxu0 0
    %648 = vmatpush.bf16.msra.mxu0 0
    %649 = vmatpush.bf16.msra.mxu0 0
    %650 = vmatpush.bf16.msra.mxu0 0
    %651 = vmatpush.bf16.msra.mxu0 0
    %652 = vmatpush.bf16.msra.mxu0 %v643
    %653 = vmatmul.bf16.gmra.mxu0 %v640
    %v654 = vpop.f32.mrf.mxu0
    %v655 = vadd.f32 0.0, %v654
    %v656 = vpop.f32.mrf.mxu0
    %657 = vdwg.mxu0
    %658 = vrot.lane.b32.xlu0 %v530, 96
    %v659 = vpop.permute.xlu0 %658
    %660 = vrot.lane.b32.xlu0 %v535, 96
    %v661 = vpop.permute.xlu0 %660
    %v663 = vsel %vm425, %v659, 0
    %v666 = vsel %vm425, %v661, 0
    %668 = vmatpush.bf16.xpose.msra.mxu0 0
    %669 = vmatpush.bf16.xpose.msra.mxu0 0
    %670 = vmatpush.bf16.xpose.msra.mxu0 0
    %671 = vmatpush.bf16.xpose.msra.mxu0 0
    %672 = vmatpush.bf16.xpose.msra.mxu0 0
    %673 = vmatpush.bf16.xpose.msra.mxu0 0
    %674 = vmatpush.bf16.xpose.msra.mxu0 0
    %675 = vmatpush.bf16.xpose.msra.mxu0 %v666
    %676 = vmatmul.bf16.gmra.mxu0 %v663
    %v677 = vpop.f32.mrf.mxu0
    %v678 = vadd.f32 0.0, %v677
    %v679 = vpop.f32.mrf.mxu0
    %680 = vdwg.mxu0
    %681 = vrot.lane.b32.xlu0 %v559, 96
    %v682 = vpop.permute.xlu0 %681
    %683 = vrot.lane.b32.xlu0 %v564, 96
    %v684 = vpop.permute.xlu0 %683
    %v686 = vsel %vm425, %v682, 0
    %v689 = vsel %vm425, %v684, 0
    %691 = vmatpush.bf16.xpose.msra.mxu0 0
    %692 = vmatpush.bf16.xpose.msra.mxu0 0
    %693 = vmatpush.bf16.xpose.msra.mxu0 0
    %694 = vmatpush.bf16.xpose.msra.mxu0 0
    %695 = vmatpush.bf16.xpose.msra.mxu0 0
    %696 = vmatpush.bf16.xpose.msra.mxu0 0
    %697 = vmatpush.bf16.xpose.msra.mxu0 0
    %698 = vmatpush.bf16.xpose.msra.mxu0 %v689
    %699 = vmatmul.bf16.gmra.mxu0 %v686
    %v700 = vpop.f32.mrf.mxu0
    %v701 = vadd.f32 0.0, %v700
    %v702 = vpop.f32.mrf.mxu0
    %703 = vdwg.mxu0
    %v704 = vsel %vm464, %v678, -inf
    %705 = vmax.xlane.f32.xlu0 %v704
    %v706 = vpop.xlane.xlu0 %705
    %v707 = vsel %vm464, %v701, -inf
    %708 = vmax.xlane.f32.xlu0 %v707
    %v709 = vpop.xlane.xlu0 %708
    %v710 = vsub.f32 %v678, %v706
    %v711 = vsub.f32 %v701, %v709
    %v712 = vmul.f32 %v710, 1.442695
    %v713 = vpow.pop %v712
    %v714 = vmul.f32 %v711, 1.442695
    %v715 = vpow.pop %v714
    %v716 = vsel %vm464, %v713, 0.0
    %717 = vadd.xlane.f32.xlu0 %v716
    %v718 = vpop.xlane.xlu0 %717
    %v719 = vsel %vm464, %v715, 0.0
    %720 = vadd.xlane.f32.xlu0 %v719
    %v721 = vpop.xlane.xlu0 %720
    %v722 = vrcp.pop %v718
    %v723 = vrcp.pop %v721
    %v724 = vmul.f32 %v713, %v722
    %v725 = vmul.f32 %v715, %v723
    %v726 = vpack.c.bf16 %v724, %v724
    %v727 = vpack.c.bf16 %v725, %v725
    %728 = vrot.lane.b32.xlu0 %v612, 96
    %v729 = vpop.permute.xlu0 %728
    %v731 = vsel %vm464, %v726, 0
    %v734 = vsel %vm492, %v729, 0
    %736 = vmatpush.bf16.msra.mxu0 0
    %737 = vmatpush.bf16.msra.mxu0 0
    %738 = vmatpush.bf16.msra.mxu0 0
    %739 = vmatpush.bf16.msra.mxu0 0
    %740 = vmatpush.bf16.msra.mxu0 0
    %741 = vmatpush.bf16.msra.mxu0 0
    %742 = vmatpush.bf16.msra.mxu0 0
    %743 = vmatpush.bf16.msra.mxu0 %v734
    %744 = vmatmul.bf16.gmra.mxu0 %v731
    %v745 = vpop.f32.mrf.mxu0
    %v746 = vadd.f32 0.0, %v745
    %v747 = vpop.f32.mrf.mxu0
    %748 = vdwg.mxu0
    %749 = vrot.lane.b32.xlu0 %v636, 96
    %v750 = vpop.permute.xlu0 %749
    %v752 = vsel %vm464, %v727, 0
    %v755 = vsel %vm492, %v750, 0
    %757 = vmatpush.bf16.msra.mxu0 0
    %758 = vmatpush.bf16.msra.mxu0 0
    %759 = vmatpush.bf16.msra.mxu0 0
    %760 = vmatpush.bf16.msra.mxu0 0
    %761 = vmatpush.bf16.msra.mxu0 0
    %762 = vmatpush.bf16.msra.mxu0 0
    %763 = vmatpush.bf16.msra.mxu0 0
    %764 = vmatpush.bf16.msra.mxu0 %v755
    %765 = vmatmul.bf16.gmra.mxu0 %v752
    %v766 = vpop.f32.mrf.mxu0
    %v767 = vadd.f32 0.0, %v766
    %v768 = vpop.f32.mrf.mxu0
    %769 = vdwg.mxu0
    %770 = vrot.lane.b32.xlu0 %v530, 80
    %v771 = vpop.permute.xlu0 %770
    %772 = vrot.lane.b32.xlu0 %v535, 80
    %v773 = vpop.permute.xlu0 %772
    %v775 = vsel %vm425, %v771, 0
    %v778 = vsel %vm425, %v773, 0
    %780 = vmatpush.bf16.xpose.msra.mxu0 0
    %781 = vmatpush.bf16.xpose.msra.mxu0 0
    %782 = vmatpush.bf16.xpose.msra.mxu0 0
    %783 = vmatpush.bf16.xpose.msra.mxu0 0
    %784 = vmatpush.bf16.xpose.msra.mxu0 0
    %785 = vmatpush.bf16.xpose.msra.mxu0 0
    %786 = vmatpush.bf16.xpose.msra.mxu0 0
    %787 = vmatpush.bf16.xpose.msra.mxu0 %v778
    %788 = vmatmul.bf16.gmra.mxu0 %v775
    %v789 = vpop.f32.mrf.mxu0
    %v790 = vadd.f32 0.0, %v789
    %v791 = vpop.f32.mrf.mxu0
    %792 = vdwg.mxu0
    %793 = vrot.lane.b32.xlu0 %v559, 80
    %v794 = vpop.permute.xlu0 %793
    %795 = vrot.lane.b32.xlu0 %v564, 80
    %v796 = vpop.permute.xlu0 %795
    %v798 = vsel %vm425, %v794, 0
    %v801 = vsel %vm425, %v796, 0
    %803 = vmatpush.bf16.xpose.msra.mxu0 0
    %804 = vmatpush.bf16.xpose.msra.mxu0 0
    %805 = vmatpush.bf16.xpose.msra.mxu0 0
    %806 = vmatpush.bf16.xpose.msra.mxu0 0
    %807 = vmatpush.bf16.xpose.msra.mxu0 0
    %808 = vmatpush.bf16.xpose.msra.mxu0 0
    %809 = vmatpush.bf16.xpose.msra.mxu0 0
    %810 = vmatpush.bf16.xpose.msra.mxu0 %v801
    %811 = vmatmul.bf16.gmra.mxu0 %v798
    %v812 = vpop.f32.mrf.mxu0
    %v813 = vadd.f32 0.0, %v812
    %v814 = vpop.f32.mrf.mxu0
    %815 = vdwg.mxu0
    %v816 = vsel %vm464, %v790, -inf
    %817 = vmax.xlane.f32.xlu0 %v816
    %v818 = vpop.xlane.xlu0 %817
    %v819 = vsel %vm464, %v813, -inf
    %820 = vmax.xlane.f32.xlu0 %v819
    %v821 = vpop.xlane.xlu0 %820
    %v822 = vsub.f32 %v790, %v818
    %v823 = vsub.f32 %v813, %v821
    %v824 = vmul.f32 %v822, 1.442695
    %v825 = vpow.pop %v824
    %v826 = vmul.f32 %v823, 1.442695
    %v827 = vpow.pop %v826
    %v828 = vsel %vm464, %v825, 0.0
    %829 = vadd.xlane.f32.xlu0 %v828
    %v830 = vpop.xlane.xlu0 %829
    %v831 = vsel %vm464, %v827, 0.0
    %832 = vadd.xlane.f32.xlu0 %v831
    %v833 = vpop.xlane.xlu0 %832
    %v834 = vrcp.pop %v830
    %v835 = vrcp.pop %v833
    %v836 = vmul.f32 %v825, %v834
    %v837 = vmul.f32 %v827, %v835
    %v838 = vpack.c.bf16 %v836, %v836
    %v839 = vpack.c.bf16 %v837, %v837
    %840 = vrot.lane.b32.xlu0 %v612, 80
    %v841 = vpop.permute.xlu0 %840
    %v843 = vsel %vm464, %v838, 0
    %v846 = vsel %vm492, %v841, 0
    %848 = vmatpush.bf16.msra.mxu0 0
    %849 = vmatpush.bf16.msra.mxu0 0
    %850 = vmatpush.bf16.msra.mxu0 0
    %851 = vmatpush.bf16.msra.mxu0 0
    %852 = vmatpush.bf16.msra.mxu0 0
    %853 = vmatpush.bf16.msra.mxu0 0
    %854 = vmatpush.bf16.msra.mxu0 0
    %855 = vmatpush.bf16.msra.mxu0 %v846
    %856 = vmatmul.bf16.gmra.mxu0 %v843
    %v857 = vpop.f32.mrf.mxu0
    %v858 = vadd.f32 0.0, %v857
    %v859 = vpop.f32.mrf.mxu0
    %860 = vdwg.mxu0
    %861 = vrot.lane.b32.xlu0 %v636, 80
    %v862 = vpop.permute.xlu0 %861
    %v864 = vsel %vm464, %v839, 0
    %v867 = vsel %vm492, %v862, 0
    %869 = vmatpush.bf16.msra.mxu0 0
    %870 = vmatpush.bf16.msra.mxu0 0
    %871 = vmatpush.bf16.msra.mxu0 0
    %872 = vmatpush.bf16.msra.mxu0 0
    %873 = vmatpush.bf16.msra.mxu0 0
    %874 = vmatpush.bf16.msra.mxu0 0
    %875 = vmatpush.bf16.msra.mxu0 0
    %876 = vmatpush.bf16.msra.mxu0 %v867
    %877 = vmatmul.bf16.gmra.mxu0 %v864
    %v878 = vpop.f32.mrf.mxu0
    %v879 = vadd.f32 0.0, %v878
    %v880 = vpop.f32.mrf.mxu0
    %881 = vdwg.mxu0
    %882 = vrot.lane.b32.xlu0 %v530, 64
    %v883 = vpop.permute.xlu0 %882
    %884 = vrot.lane.b32.xlu0 %v535, 64
    %v885 = vpop.permute.xlu0 %884
    %v887 = vsel %vm425, %v883, 0
    %v890 = vsel %vm425, %v885, 0
    %892 = vmatpush.bf16.xpose.msra.mxu0 0
    %893 = vmatpush.bf16.xpose.msra.mxu0 0
    %894 = vmatpush.bf16.xpose.msra.mxu0 0
    %895 = vmatpush.bf16.xpose.msra.mxu0 0
    %896 = vmatpush.bf16.xpose.msra.mxu0 0
    %897 = vmatpush.bf16.xpose.msra.mxu0 0
    %898 = vmatpush.bf16.xpose.msra.mxu0 0
    %899 = vmatpush.bf16.xpose.msra.mxu0 %v890
    %900 = vmatmul.bf16.gmra.mxu0 %v887
    %v901 = vpop.f32.mrf.mxu0
    %v902 = vadd.f32 0.0, %v901
    %v903 = vpop.f32.mrf.mxu0
    %904 = vdwg.mxu0
    %905 = vrot.lane.b32.xlu0 %v559, 64
    %v906 = vpop.permute.xlu0 %905
    %907 = vrot.lane.b32.xlu0 %v564, 64
    %v908 = vpop.permute.xlu0 %907
    %v910 = vsel %vm425, %v906, 0
    %v913 = vsel %vm425, %v908, 0
    %915 = vmatpush.bf16.xpose.msra.mxu0 0
    %916 = vmatpush.bf16.xpose.msra.mxu0 0
    %917 = vmatpush.bf16.xpose.msra.mxu0 0
    %918 = vmatpush.bf16.xpose.msra.mxu0 0
    %919 = vmatpush.bf16.xpose.msra.mxu0 0
    %920 = vmatpush.bf16.xpose.msra.mxu0 0
    %921 = vmatpush.bf16.xpose.msra.mxu0 0
    %922 = vmatpush.bf16.xpose.msra.mxu0 %v913
    %923 = vmatmul.bf16.gmra.mxu0 %v910
    %v924 = vpop.f32.mrf.mxu0
    %v925 = vadd.f32 0.0, %v924
    %v926 = vpop.f32.mrf.mxu0
    %927 = vdwg.mxu0
    %v928 = vsel %vm464, %v902, -inf
    %929 = vmax.xlane.f32.xlu0 %v928
    %v930 = vpop.xlane.xlu0 %929
    %v931 = vsel %vm464, %v925, -inf
    %932 = vmax.xlane.f32.xlu0 %v931
    %v933 = vpop.xlane.xlu0 %932
    %v934 = vsub.f32 %v902, %v930
    %v935 = vsub.f32 %v925, %v933
    %v936 = vmul.f32 %v934, 1.442695
    %v937 = vpow.pop %v936
    %v938 = vmul.f32 %v935, 1.442695
    %v939 = vpow.pop %v938
    %v940 = vsel %vm464, %v937, 0.0
    %941 = vadd.xlane.f32.xlu0 %v940
    %v942 = vpop.xlane.xlu0 %941
    %v943 = vsel %vm464, %v939, 0.0
    %944 = vadd.xlane.f32.xlu0 %v943
    %v945 = vpop.xlane.xlu0 %944
    %v946 = vrcp.pop %v942
    %v947 = vrcp.pop %v945
    %v948 = vmul.f32 %v937, %v946
    %v949 = vmul.f32 %v939, %v947
    %v950 = vpack.c.bf16 %v948, %v948
    %v951 = vpack.c.bf16 %v949, %v949
    %952 = vrot.lane.b32.xlu0 %v612, 64
    %v953 = vpop.permute.xlu0 %952
    %v955 = vsel %vm464, %v950, 0
    %v958 = vsel %vm492, %v953, 0
    %960 = vmatpush.bf16.msra.mxu0 0
    %961 = vmatpush.bf16.msra.mxu0 0
    %962 = vmatpush.bf16.msra.mxu0 0
    %963 = vmatpush.bf16.msra.mxu0 0
    %964 = vmatpush.bf16.msra.mxu0 0
    %965 = vmatpush.bf16.msra.mxu0 0
    %966 = vmatpush.bf16.msra.mxu0 0
    %967 = vmatpush.bf16.msra.mxu0 %v958
    %968 = vmatmul.bf16.gmra.mxu0 %v955
    %v969 = vpop.f32.mrf.mxu0
    %v970 = vadd.f32 0.0, %v969
    %v971 = vpop.f32.mrf.mxu0
    %972 = vdwg.mxu0
    %973 = vrot.lane.b32.xlu0 %v636, 64
    %v974 = vpop.permute.xlu0 %973
    %v976 = vsel %vm464, %v951, 0
    %v979 = vsel %vm492, %v974, 0
    %981 = vmatpush.bf16.msra.mxu0 0
    %982 = vmatpush.bf16.msra.mxu0 0
    %983 = vmatpush.bf16.msra.mxu0 0
    %984 = vmatpush.bf16.msra.mxu0 0
    %985 = vmatpush.bf16.msra.mxu0 0
    %986 = vmatpush.bf16.msra.mxu0 0
    %987 = vmatpush.bf16.msra.mxu0 0
    %988 = vmatpush.bf16.msra.mxu0 %v979
    %989 = vmatmul.bf16.gmra.mxu0 %v976
    %v990 = vpop.f32.mrf.mxu0
    %v991 = vadd.f32 0.0, %v990
    %v992 = vpop.f32.mrf.mxu0
    %993 = vdwg.mxu0
    %994 = vrot.lane.b32.xlu0 %v530, 48
    %v995 = vpop.permute.xlu0 %994
    %996 = vrot.lane.b32.xlu0 %v535, 48
    %v997 = vpop.permute.xlu0 %996
    %v999 = vsel %vm425, %v995, 0
    %v1002 = vsel %vm425, %v997, 0
    %1004 = vmatpush.bf16.xpose.msra.mxu0 0
    %1005 = vmatpush.bf16.xpose.msra.mxu0 0
    %1006 = vmatpush.bf16.xpose.msra.mxu0 0
    %1007 = vmatpush.bf16.xpose.msra.mxu0 0
    %1008 = vmatpush.bf16.xpose.msra.mxu0 0
    %1009 = vmatpush.bf16.xpose.msra.mxu0 0
    %1010 = vmatpush.bf16.xpose.msra.mxu0 0
    %1011 = vmatpush.bf16.xpose.msra.mxu0 %v1002
    %1012 = vmatmul.bf16.gmra.mxu0 %v999
    %v1013 = vpop.f32.mrf.mxu0
    %v1014 = vadd.f32 0.0, %v1013
    %v1015 = vpop.f32.mrf.mxu0
    %1016 = vdwg.mxu0
    %1017 = vrot.lane.b32.xlu0 %v559, 48
    %v1018 = vpop.permute.xlu0 %1017
    %1019 = vrot.lane.b32.xlu0 %v564, 48
    %v1020 = vpop.permute.xlu0 %1019
    %v1022 = vsel %vm425, %v1018, 0
    %v1025 = vsel %vm425, %v1020, 0
    %1027 = vmatpush.bf16.xpose.msra.mxu0 0
    %1028 = vmatpush.bf16.xpose.msra.mxu0 0
    %1029 = vmatpush.bf16.xpose.msra.mxu0 0
    %1030 = vmatpush.bf16.xpose.msra.mxu0 0
    %1031 = vmatpush.bf16.xpose.msra.mxu0 0
    %1032 = vmatpush.bf16.xpose.msra.mxu0 0
    %1033 = vmatpush.bf16.xpose.msra.mxu0 0
    %1034 = vmatpush.bf16.xpose.msra.mxu0 %v1025
    %1035 = vmatmul.bf16.gmra.mxu0 %v1022
    %v1036 = vpop.f32.mrf.mxu0
    %v1037 = vadd.f32 0.0, %v1036
    %v1038 = vpop.f32.mrf.mxu0
    %1039 = vdwg.mxu0
    %v1040 = vsel %vm464, %v1014, -inf
    %1041 = vmax.xlane.f32.xlu0 %v1040
    %v1042 = vpop.xlane.xlu0 %1041
    %v1043 = vsel %vm464, %v1037, -inf
    %1044 = vmax.xlane.f32.xlu0 %v1043
    %v1045 = vpop.xlane.xlu0 %1044
    %v1046 = vsub.f32 %v1014, %v1042
    %v1047 = vsub.f32 %v1037, %v1045
    %v1048 = vmul.f32 %v1046, 1.442695
    %v1049 = vpow.pop %v1048
    %v1050 = vmul.f32 %v1047, 1.442695
    %v1051 = vpow.pop %v1050
    %v1052 = vsel %vm464, %v1049, 0.0
    %1053 = vadd.xlane.f32.xlu0 %v1052
    %v1054 = vpop.xlane.xlu0 %1053
    %v1055 = vsel %vm464, %v1051, 0.0
    %1056 = vadd.xlane.f32.xlu0 %v1055
    %v1057 = vpop.xlane.xlu0 %1056
    %v1058 = vrcp.pop %v1054
    %v1059 = vrcp.pop %v1057
    %v1060 = vmul.f32 %v1049, %v1058
    %v1061 = vmul.f32 %v1051, %v1059
    %v1062 = vpack.c.bf16 %v1060, %v1060
    %v1063 = vpack.c.bf16 %v1061, %v1061
    %1064 = vrot.lane.b32.xlu0 %v612, 48
    %v1065 = vpop.permute.xlu0 %1064
    %v1067 = vsel %vm464, %v1062, 0
    %v1070 = vsel %vm492, %v1065, 0
    %1072 = vmatpush.bf16.msra.mxu0 0
    %1073 = vmatpush.bf16.msra.mxu0 0
    %1074 = vmatpush.bf16.msra.mxu0 0
    %1075 = vmatpush.bf16.msra.mxu0 0
    %1076 = vmatpush.bf16.msra.mxu0 0
    %1077 = vmatpush.bf16.msra.mxu0 0
    %1078 = vmatpush.bf16.msra.mxu0 0
    %1079 = vmatpush.bf16.msra.mxu0 %v1070
    %1080 = vmatmul.bf16.gmra.mxu0 %v1067
    %v1081 = vpop.f32.mrf.mxu0
    %v1082 = vadd.f32 0.0, %v1081
    %v1083 = vpop.f32.mrf.mxu0
    %1084 = vdwg.mxu0
    %1085 = vrot.lane.b32.xlu0 %v636, 48
    %v1086 = vpop.permute.xlu0 %1085
    %v1088 = vsel %vm464, %v1063, 0
    %v1091 = vsel %vm492, %v1086, 0
    %1093 = vmatpush.bf16.msra.mxu0 0
    %1094 = vmatpush.bf16.msra.mxu0 0
    %1095 = vmatpush.bf16.msra.mxu0 0
    %1096 = vmatpush.bf16.msra.mxu0 0
    %1097 = vmatpush.bf16.msra.mxu0 0
    %1098 = vmatpush.bf16.msra.mxu0 0
    %1099 = vmatpush.bf16.msra.mxu0 0
    %1100 = vmatpush.bf16.msra.mxu0 %v1091
    %1101 = vmatmul.bf16.gmra.mxu0 %v1088
    %v1102 = vpop.f32.mrf.mxu0
    %v1103 = vadd.f32 0.0, %v1102
    %v1104 = vpop.f32.mrf.mxu0
    %1105 = vdwg.mxu0
    %1106 = vrot.lane.b32.xlu0 %v530, 32
    %v1107 = vpop.permute.xlu0 %1106
    %1108 = vrot.lane.b32.xlu0 %v535, 32
    %v1109 = vpop.permute.xlu0 %1108
    %v1111 = vsel %vm425, %v1107, 0
    %v1114 = vsel %vm425, %v1109, 0
    %1116 = vmatpush.bf16.xpose.msra.mxu0 0
    %1117 = vmatpush.bf16.xpose.msra.mxu0 0
    %1118 = vmatpush.bf16.xpose.msra.mxu0 0
    %1119 = vmatpush.bf16.xpose.msra.mxu0 0
    %1120 = vmatpush.bf16.xpose.msra.mxu0 0
    %1121 = vmatpush.bf16.xpose.msra.mxu0 0
    %1122 = vmatpush.bf16.xpose.msra.mxu0 0
    %1123 = vmatpush.bf16.xpose.msra.mxu0 %v1114
    %1124 = vmatmul.bf16.gmra.mxu0 %v1111
    %v1125 = vpop.f32.mrf.mxu0
    %v1126 = vadd.f32 0.0, %v1125
    %v1127 = vpop.f32.mrf.mxu0
    %1128 = vdwg.mxu0
    %1129 = vrot.lane.b32.xlu0 %v559, 32
    %v1130 = vpop.permute.xlu0 %1129
    %1131 = vrot.lane.b32.xlu0 %v564, 32
    %v1132 = vpop.permute.xlu0 %1131
    %v1134 = vsel %vm425, %v1130, 0
    %v1137 = vsel %vm425, %v1132, 0
    %1139 = vmatpush.bf16.xpose.msra.mxu0 0
    %1140 = vmatpush.bf16.xpose.msra.mxu0 0
    %1141 = vmatpush.bf16.xpose.msra.mxu0 0
    %1142 = vmatpush.bf16.xpose.msra.mxu0 0
    %1143 = vmatpush.bf16.xpose.msra.mxu0 0
    %1144 = vmatpush.bf16.xpose.msra.mxu0 0
    %1145 = vmatpush.bf16.xpose.msra.mxu0 0
    %1146 = vmatpush.bf16.xpose.msra.mxu0 %v1137
    %1147 = vmatmul.bf16.gmra.mxu0 %v1134
    %v1148 = vpop.f32.mrf.mxu0
    %v1149 = vadd.f32 0.0, %v1148
    %v1150 = vpop.f32.mrf.mxu0
    %1151 = vdwg.mxu0
    %v1152 = vsel %vm464, %v1126, -inf
    %1153 = vmax.xlane.f32.xlu0 %v1152
    %v1154 = vpop.xlane.xlu0 %1153
    %v1155 = vsel %vm464, %v1149, -inf
    %1156 = vmax.xlane.f32.xlu0 %v1155
    %v1157 = vpop.xlane.xlu0 %1156
    %v1158 = vsub.f32 %v1126, %v1154
    %v1159 = vsub.f32 %v1149, %v1157
    %v1160 = vmul.f32 %v1158, 1.442695
    %v1161 = vpow.pop %v1160
    %v1162 = vmul.f32 %v1159, 1.442695
    %v1163 = vpow.pop %v1162
    %v1164 = vsel %vm464, %v1161, 0.0
    %1165 = vadd.xlane.f32.xlu0 %v1164
    %v1166 = vpop.xlane.xlu0 %1165
    %v1167 = vsel %vm464, %v1163, 0.0
    %1168 = vadd.xlane.f32.xlu0 %v1167
    %v1169 = vpop.xlane.xlu0 %1168
    %v1170 = vrcp.pop %v1166
    %v1171 = vrcp.pop %v1169
    %v1172 = vmul.f32 %v1161, %v1170
    %v1173 = vmul.f32 %v1163, %v1171
    %v1174 = vpack.c.bf16 %v1172, %v1172
    %v1175 = vpack.c.bf16 %v1173, %v1173
    %1176 = vrot.lane.b32.xlu0 %v612, 32
    %v1177 = vpop.permute.xlu0 %1176
    %v1179 = vsel %vm464, %v1174, 0
    %v1182 = vsel %vm492, %v1177, 0
    %1184 = vmatpush.bf16.msra.mxu0 0
    %1185 = vmatpush.bf16.msra.mxu0 0
    %1186 = vmatpush.bf16.msra.mxu0 0
    %1187 = vmatpush.bf16.msra.mxu0 0
    %1188 = vmatpush.bf16.msra.mxu0 0
    %1189 = vmatpush.bf16.msra.mxu0 0
    %1190 = vmatpush.bf16.msra.mxu0 0
    %1191 = vmatpush.bf16.msra.mxu0 %v1182
    %1192 = vmatmul.bf16.gmra.mxu0 %v1179
    %v1193 = vpop.f32.mrf.mxu0
    %v1194 = vadd.f32 0.0, %v1193
    %v1195 = vpop.f32.mrf.mxu0
    %1196 = vdwg.mxu0
    %1197 = vrot.lane.b32.xlu0 %v636, 32
    %v1198 = vpop.permute.xlu0 %1197
    %v1200 = vsel %vm464, %v1175, 0
    %v1203 = vsel %vm492, %v1198, 0
    %1205 = vmatpush.bf16.msra.mxu0 0
    %1206 = vmatpush.bf16.msra.mxu0 0
    %1207 = vmatpush.bf16.msra.mxu0 0
    %1208 = vmatpush.bf16.msra.mxu0 0
    %1209 = vmatpush.bf16.msra.mxu0 0
    %1210 = vmatpush.bf16.msra.mxu0 0
    %1211 = vmatpush.bf16.msra.mxu0 0
    %1212 = vmatpush.bf16.msra.mxu0 %v1203
    %1213 = vmatmul.bf16.gmra.mxu0 %v1200
    %v1214 = vpop.f32.mrf.mxu0
    %v1215 = vadd.f32 0.0, %v1214
    %v1216 = vpop.f32.mrf.mxu0
    %1217 = vdwg.mxu0
    %1218 = vrot.lane.b32.xlu0 %v530, 16
    %v1219 = vpop.permute.xlu0 %1218
    %1220 = vrot.lane.b32.xlu0 %v535, 16
    %v1221 = vpop.permute.xlu0 %1220
    %v1223 = vsel %vm425, %v1219, 0
    %v1226 = vsel %vm425, %v1221, 0
    %1228 = vmatpush.bf16.xpose.msra.mxu0 0
    %1229 = vmatpush.bf16.xpose.msra.mxu0 0
    %1230 = vmatpush.bf16.xpose.msra.mxu0 0
    %1231 = vmatpush.bf16.xpose.msra.mxu0 0
    %1232 = vmatpush.bf16.xpose.msra.mxu0 0
    %1233 = vmatpush.bf16.xpose.msra.mxu0 0
    %1234 = vmatpush.bf16.xpose.msra.mxu0 0
    %1235 = vmatpush.bf16.xpose.msra.mxu0 %v1226
    %1236 = vmatmul.bf16.gmra.mxu0 %v1223
    %v1237 = vpop.f32.mrf.mxu0
    %v1238 = vadd.f32 0.0, %v1237
    %v1239 = vpop.f32.mrf.mxu0
    %1240 = vdwg.mxu0
    %1241 = vrot.lane.b32.xlu0 %v559, 16
    %v1242 = vpop.permute.xlu0 %1241
    %1243 = vrot.lane.b32.xlu0 %v564, 16
    %v1244 = vpop.permute.xlu0 %1243
    %v1246 = vsel %vm425, %v1242, 0
    %v1249 = vsel %vm425, %v1244, 0
    %1251 = vmatpush.bf16.xpose.msra.mxu0 0
    %1252 = vmatpush.bf16.xpose.msra.mxu0 0
    %1253 = vmatpush.bf16.xpose.msra.mxu0 0
    %1254 = vmatpush.bf16.xpose.msra.mxu0 0
    %1255 = vmatpush.bf16.xpose.msra.mxu0 0
    %1256 = vmatpush.bf16.xpose.msra.mxu0 0
    %1257 = vmatpush.bf16.xpose.msra.mxu0 0
    %1258 = vmatpush.bf16.xpose.msra.mxu0 %v1249
    %1259 = vmatmul.bf16.gmra.mxu0 %v1246
    %v1260 = vpop.f32.mrf.mxu0
    %v1261 = vadd.f32 0.0, %v1260
    %v1262 = vpop.f32.mrf.mxu0
    %1263 = vdwg.mxu0
    %v1264 = vsel %vm464, %v1238, -inf
    %1265 = vmax.xlane.f32.xlu0 %v1264
    %v1266 = vpop.xlane.xlu0 %1265
    %v1267 = vsel %vm464, %v1261, -inf
    %1268 = vmax.xlane.f32.xlu0 %v1267
    %v1269 = vpop.xlane.xlu0 %1268
    %v1270 = vsub.f32 %v1238, %v1266
    %v1271 = vsub.f32 %v1261, %v1269
    %v1272 = vmul.f32 %v1270, 1.442695
    %v1273 = vpow.pop %v1272
    %v1274 = vmul.f32 %v1271, 1.442695
    %v1275 = vpow.pop %v1274
    %v1276 = vsel %vm464, %v1273, 0.0
    %1277 = vadd.xlane.f32.xlu0 %v1276
    %v1278 = vpop.xlane.xlu0 %1277
    %v1279 = vsel %vm464, %v1275, 0.0
    %1280 = vadd.xlane.f32.xlu0 %v1279
    %v1281 = vpop.xlane.xlu0 %1280
    %v1282 = vrcp.pop %v1278
    %v1283 = vrcp.pop %v1281
    %v1284 = vmul.f32 %v1273, %v1282
    %v1285 = vmul.f32 %v1275, %v1283
    %v1286 = vpack.c.bf16 %v1284, %v1284
    %v1287 = vpack.c.bf16 %v1285, %v1285
    %1288 = vrot.lane.b32.xlu0 %v612, 16
    %v1289 = vpop.permute.xlu0 %1288
    %v1291 = vsel %vm464, %v1286, 0
    %v1294 = vsel %vm492, %v1289, 0
    %1296 = vmatpush.bf16.msra.mxu0 0
    %1297 = vmatpush.bf16.msra.mxu0 0
    %1298 = vmatpush.bf16.msra.mxu0 0
    %1299 = vmatpush.bf16.msra.mxu0 0
    %1300 = vmatpush.bf16.msra.mxu0 0
    %1301 = vmatpush.bf16.msra.mxu0 0
    %1302 = vmatpush.bf16.msra.mxu0 0
    %1303 = vmatpush.bf16.msra.mxu0 %v1294
    %1304 = vmatmul.bf16.gmra.mxu0 %v1291
    %v1305 = vpop.f32.mrf.mxu0
    %v1306 = vadd.f32 0.0, %v1305
    %v1307 = vpop.f32.mrf.mxu0
    %1308 = vdwg.mxu0
    %1309 = vrot.lane.b32.xlu0 %v636, 16
    %v1310 = vpop.permute.xlu0 %1309
    %v1312 = vsel %vm464, %v1287, 0
    %v1315 = vsel %vm492, %v1310, 0
    %1317 = vmatpush.bf16.msra.mxu0 0
    %1318 = vmatpush.bf16.msra.mxu0 0
    %1319 = vmatpush.bf16.msra.mxu0 0
    %1320 = vmatpush.bf16.msra.mxu0 0
    %1321 = vmatpush.bf16.msra.mxu0 0
    %1322 = vmatpush.bf16.msra.mxu0 0
    %1323 = vmatpush.bf16.msra.mxu0 0
    %1324 = vmatpush.bf16.msra.mxu0 %v1315
    %1325 = vmatmul.bf16.gmra.mxu0 %v1312
    %v1326 = vpop.f32.mrf.mxu0
    %v1327 = vadd.f32 0.0, %v1326
    %v1328 = vpop.f32.mrf.mxu0
    %1329 = vdwg.mxu0
    %1332 = vrot.lane.b32.xlu0 %v631, 16
    %v1333 = vpop.permute.xlu0 %1332
    %1334 = vrot.lane.b32.xlu0 %v655, 16
    %v1335 = vpop.permute.xlu0 %1334
    %1340 = vrot.lane.b32.xlu0 %v746, 32
    %v1341 = vpop.permute.xlu0 %1340
    %1342 = vrot.lane.b32.xlu0 %v767, 32
    %v1343 = vpop.permute.xlu0 %1342
    %1348 = vrot.lane.b32.xlu0 %v858, 48
    %v1349 = vpop.permute.xlu0 %1348
    %1350 = vrot.lane.b32.xlu0 %v879, 48
    %v1351 = vpop.permute.xlu0 %1350
    %1356 = vrot.lane.b32.xlu0 %v970, 64
    %v1357 = vpop.permute.xlu0 %1356
    %1358 = vrot.lane.b32.xlu0 %v991, 64
    %v1359 = vpop.permute.xlu0 %1358
    %1364 = vrot.lane.b32.xlu0 %v1082, 80
    %v1365 = vpop.permute.xlu0 %1364
    %1366 = vrot.lane.b32.xlu0 %v1103, 80
    %v1367 = vpop.permute.xlu0 %1366
    %1372 = vrot.lane.b32.xlu0 %v1194, 96
    %v1373 = vpop.permute.xlu0 %1372
    %1374 = vrot.lane.b32.xlu0 %v1215, 96
    %v1375 = vpop.permute.xlu0 %1374
    %1380 = vrot.lane.b32.xlu0 %v1306, 112
    %v1381 = vpop.permute.xlu0 %1380
    %1382 = vrot.lane.b32.xlu0 %v1327, 112
    %v1383 = vpop.permute.xlu0 %1382
    %v1386 = vsel %vm425, %v506, %v1333
    %v1387 = vsel %vm425, %v525, %v1335
    %vm1388 = vcmask 261120
    %v1389 = vsel %vm1388, %v1386, %v1341
    %v1390 = vsel %vm1388, %v1387, %v1343
    %vm1391 = vcmask 392192
    %v1392 = vsel %vm1391, %v1389, %v1349
    %v1393 = vsel %vm1391, %v1390, %v1351
    %vm1394 = vcmask 523264
    %v1395 = vsel %vm1394, %v1392, %v1357
    %v1396 = vsel %vm1394, %v1393, %v1359
    %vm1397 = vcmask 654336
    %v1398 = vsel %vm1397, %v1395, %v1365
    %v1399 = vsel %vm1397, %v1396, %v1367
    %vm1400 = vcmask 785408
    %v1401 = vsel %vm1400, %v1398, %v1373
    %v1402 = vsel %vm1400, %v1399, %v1375
    %vm1403 = vcmask 916480
    %v1404 = vsel %vm1403, %v1401, %v1381
    %v1405 = vsel %vm1403, %v1402, %v1383
    %v1406 = vpack.c.bf16 %v1405, %v1404
    %v1407 = vld [vmem:[#allocation13] sm:$0xf]
    %v1408 = vld [vmem:[#allocation13 + $0x4] sm:$0xf]
    %v1409 = vld [vmem:[#allocation13 + $0x8] sm:$0xf]
    %v1410 = vld [vmem:[#allocation13 + $0xc] sm:$0xf]
    %v1411 = vld [vmem:[#allocation13 + $0x10] sm:$0xf]
    %v1412 = vld [vmem:[#allocation13 + $0x14] sm:$0xf]
    %v1413 = vld [vmem:[#allocation13 + $0x18] sm:$0xf]
    %v1414 = vld [vmem:[#allocation13 + $0x1c] sm:$0xf]
    %v1415 = vld [vmem:[#allocation13 + $0x20] sm:$0xf]
    %v1416 = vld [vmem:[#allocation13 + $0x24] sm:$0xf]
    %v1417 = vld [vmem:[#allocation13 + $0x28] sm:$0xf]
    %v1418 = vld [vmem:[#allocation13 + $0x2c] sm:$0xf]
    %v1419 = vld [vmem:[#allocation13 + $0x30] sm:$0xf]
    %v1420 = vld [vmem:[#allocation13 + $0x34] sm:$0xf]
    %v1421 = vld [vmem:[#allocation13 + $0x38] sm:$0xf]
    %v1422 = vld [vmem:[#allocation13 + $0x3c] sm:$0xf]
    %v1423 = vld [vmem:[%s10] sm:$0x1]
    %v1425 = vperm.slane %v1423, 0
    %v1443 = vunpack.c.l.b16 %v1407
    %v1444 = vunpack.c.l.b16 %v1408
    %v1445 = vunpack.c.l.b16 %v1409
    %v1446 = vunpack.c.l.b16 %v1410
    %v1447 = vunpack.c.l.b16 %v1411
    %v1448 = vunpack.c.l.b16 %v1412
    %v1449 = vunpack.c.l.b16 %v1413
    %v1450 = vunpack.c.l.b16 %v1414
    %v1451 = vunpack.c.l.b16 %v1415
    %v1452 = vunpack.c.l.b16 %v1416
    %v1453 = vunpack.c.l.b16 %v1417
    %v1454 = vunpack.c.l.b16 %v1418
    %v1455 = vunpack.c.l.b16 %v1419
    %v1456 = vunpack.c.l.b16 %v1420
    %v1457 = vunpack.c.l.b16 %v1421
    %v1458 = vunpack.c.l.b16 %v1422
    %v1459 = vpack.c.b16 %v1444, %v1443
    %v1460 = vpack.c.b16 %v1446, %v1445
    %v1461 = vpack.c.b16 %v1448, %v1447
    %v1462 = vpack.c.b16 %v1450, %v1449
    %v1463 = vpack.c.b16 %v1452, %v1451
    %v1464 = vpack.c.b16 %v1454, %v1453
    %v1465 = vpack.c.b16 %v1456, %v1455
    %v1466 = vpack.c.b16 %v1458, %v1457
    %1475 = vmatpush.bf16.msra.mxu0 %v1466
    %1476 = vmatpush.bf16.msra.mxu0 %v1465
    %1477 = vmatpush.bf16.msra.mxu0 %v1464
    %1478 = vmatpush.bf16.msra.mxu0 %v1463
    %1479 = vmatpush.bf16.msra.mxu0 %v1462
    %1480 = vmatpush.bf16.msra.mxu0 %v1461
    %1481 = vmatpush.bf16.msra.mxu0 %v1460
    %1482 = vmatpush.bf16.msra.mxu0 %v1459
    %1483 = vmatmul.bf16.gmra.mxu0 %v1406
    %v1484 = vpop.f32.mrf.mxu0
    %v1485 = vadd.f32 %v1425, %v1484
    %v1486 = vpop.f32.mrf.mxu0
    %v1487 = vadd.f32 %v1425, %v1486
    %1488 = vdwg.mxu0
    %1489 = vst [vmem:[#allocation14] sm:$0xff] %v1485
    %1490 = vst [vmem:[#allocation14 + $0x8] sm:$0xff] %v1487
    // Predicated region
    $region74: #{tpu_custom_call.1} parent=1 // pred_check
      _
    $region75: #{tpu_custom_call.1} parent=1 // pred_check_branch
      %1492 = sbr.rel (0) target = $region77
    $region76: #{tpu_custom_call.1} parent=1 // pred_region
      %1494 = vsyncadd [#allocation4], 0
      %s1495 = sshll.u32 [#allocation14], 4
      %s1496 = int_to_ptr.vmem [resolvable:$true] %s1495
      %s1497 = sshll.u32 %s11, 4
      %s1498 = int_to_ptr.hbm [resolvable:$true] %s1497
      %1503 = dma.vmem_to_hbm [thread:$0]  %s1496, 256, %s1498, [#allocation4], 128, 128, 8
    $region77: #{tpu_custom_call.1} parent=1 // pred_fallthru
      _
    // Predicated region
    $region78: #{tpu_custom_call.1} parent=1 // pred_check
      _
    $region79: #{tpu_custom_call.1} parent=1 // pred_check_branch
      %1505 = sbr.rel (0) target = $region81
    $region80: #{tpu_custom_call.1} parent=1 // pred_region
      %1507 = dma.done [#allocation4], 256
    $region81: #{tpu_custom_call.1} parent=1 // pred_fallthru
      _
    %1508 = vsyncpa [#allocation3], 1
    %1509 = vsyncpa [#allocation6], 1
    %1510 = vsyncpa [#allocation9], 1
    %1511 = vsyncpa [#allocation12], 1
    %1512 = vsyncpa [#allocation4], 1

</llo_original>
